<compile_context>
chip_gen: v6e
topology: v6e:2x2x1
jax: 0.10.0
libtpu: 0.0.40
codegen_flags: <defaults>
</compile_context>

<pallas_src>
from functools import partial

import numpy as np
import jax
import jax.numpy as jnp
from jax import lax
from jax.experimental import pallas as pl
from jax.experimental.pallas import tpu as pltpu

LN_EPS = 1e-6


# ----------------------------- Pallas kernel --------------------------------
def downsample_kernel(x_ref, p_ref, wp_ref, wc_ref, bc_ref, sel_ref, out_ref,
                      *, seq_len):
    x = x_ref[...]                                  # [R*L, C]  channels-last, R batch rows
    RL, C = x.shape
    RLo, C_out = out_ref.shape                      # RLo = R * L_out
    L = seq_len

    # packed per-channel params: rows 0-2 dw taps, 3-5 dwd taps, 6 LN gamma, 7 LN beta, 8 point bias
    p = p_ref[...]                                  # [9, C]
    wdw0, wdw1, wdw2 = p[0:1, :], p[1:2, :], p[2:3, :]
    wdd0, wdd1, wdd2 = p[3:4, :], p[4:5, :], p[5:6, :]
    ln_g, ln_b, bp = p[6:7, :], p[7:8, :], p[8:9, :]

    # per-batch-row position along L (batch rows are stacked on the sublane axis)
    lpos = lax.broadcasted_iota(jnp.int32, (RL, C), 0) % L

    # ---------------- depthwise conv, k=3, pad=1 ------------------------------
    # shifted rows via XLU roll + VPU boundary mask (zero padding, no cross-batch leak)
    x_m1 = jnp.where(lpos >= 1, pltpu.roll(x, shift=1, axis=0), 0.0)        # x[l-1]
    x_p1 = jnp.where(lpos <= L - 2, pltpu.roll(x, shift=RL - 1, axis=0), 0.0)  # x[l+1]
    y = wdw0 * x_m1 + wdw1 * x + wdw2 * x_p1

    # ------------- depthwise conv, k=3, dilation=3, pad=3 ---------------------
    y_m3 = jnp.where(lpos >= 3, pltpu.roll(y, shift=3, axis=0), 0.0)        # y[l-3]
    y_p3 = jnp.where(lpos <= L - 4, pltpu.roll(y, shift=RL - 3, axis=0), 0.0)  # y[l+3]
    z = wdd0 * y_m3 + wdd1 * y + wdd2 * y_p3

    # ---------------- LayerNorm over channels (lane axis), one-pass stats ------
    inv_c = 1.0 / C
    mu = jnp.sum(z, axis=-1, keepdims=True) * inv_c
    ex2 = jnp.sum(z * z, axis=-1, keepdims=True) * inv_c
    var = ex2 - mu * mu
    zn = (z - mu) * lax.rsqrt(var + LN_EPS) * ln_g + ln_b

    # ---------------- pointwise (1x1) conv + residual --------------------------
    h = jnp.dot(zn, wp_ref[...], preferred_element_type=jnp.float32) + bp + x   # [R*L, C]

    # -------- fused stride-2 convs (k=5 pad=2 and k=3 pad=1, combined) ---------
    # one gather matmul picks rows r*L + 2*lo + t - 2 for all taps/rows at once,
    # then one wide matmul against all 5 combined-tap weight blocks.
    a_all = jnp.dot(sel_ref[...], h, preferred_element_type=jnp.float32)     # [5*RLo, C]
    big = jnp.dot(a_all, wc_ref[...], preferred_element_type=jnp.float32)    # [5*RLo, 5*Co]
    # sum the five diagonal [RLo, C_out] blocks (static, tile-aligned slices; VPU adds)
    acc = ((big[0 * RLo:1 * RLo, 0 * C_out:1 * C_out]
            + big[1 * RLo:2 * RLo, 1 * C_out:2 * C_out])
           + (big[2 * RLo:3 * RLo, 2 * C_out:3 * C_out]
              + big[3 * RLo:4 * RLo, 3 * C_out:4 * C_out])
           + big[4 * RLo:5 * RLo, 4 * C_out:5 * C_out])
    out_ref[...] = acc + bc_ref[...]                # lane-dense [R*L_out, C_out] store


# ------------------------------ host wrapper ---------------------------------
def downsample(x, params):
    """x: [B, C, L] (PyTorch layout). Returns [B, C_out, L_out]."""
    B, C, L = x.shape
    R = params["rows_per_step"]                    # batch rows folded per grid step
    assert B % R == 0
    nsteps = B // R
    C_out = params["bc"].shape[-1]
    L_out = (L - 1) // 2 + 1

    x_flat = jnp.transpose(x, (0, 2, 1)).reshape(B * L, C)   # [B*L, C] channels-last

    w = params

    def resident(arr):                             # weights stay in VMEM across the grid
        return pl.BlockSpec(arr.shape, lambda b: (0, 0))

    in_specs = [
        pl.BlockSpec((R * L, C), lambda b: (b, 0)),          # x rows for this step
        resident(w["packed"]),                               # [9, C] per-channel params
        resident(w["wp"]),                                   # [C, C] pointwise
        resident(w["wc"]),                                   # [C, 5*C_out] fused taps
        resident(w["bc"]),                                   # [1, C_out] fused bias
        resident(w["sel"]),                                  # [5*R*L_out, R*L] gather
    ]

    flops = nsteps * (
        2 * (R * L) * C * C                                   # pointwise matmul
        + 2 * (5 * R * L_out) * (R * L) * C                   # gather matmul
        + 2 * (5 * R * L_out) * C * (5 * C_out)               # wide tap matmul
        + 20 * (R * L) * C)                                   # depthwise / LN elementwise
    bytes_accessed = 4 * int(
        x_flat.size + B * L_out * C_out
        + w["packed"].size + w["wp"].size + w["wc"].size + w["bc"].size + w["sel"].size)

    out = pl.pallas_call(
        partial(downsample_kernel, seq_len=L),
        out_shape=jax.ShapeDtypeStruct((B * L_out, C_out), jnp.float32),
        grid_spec=pltpu.PrefetchScalarGridSpec(
            num_scalar_prefetch=0,
            grid=(nsteps,),
            in_specs=in_specs,
            out_specs=pl.BlockSpec((R * L_out, C_out), lambda b: (b, 0)),
        ),
        compiler_params=pltpu.CompilerParams(
            dimension_semantics=("parallel",)),
        cost_estimate=pl.CostEstimate(
            flops=int(flops), transcendentals=int(B * L), bytes_accessed=bytes_accessed),
    )(x_flat, w["packed"], w["wp"], w["wc"], w["bc"], w["sel"])

    return jnp.transpose(out.reshape(B, L_out, C_out), (0, 2, 1))   # [B, C_out, L_out]


# -------------------------- host-side weight prep ----------------------------
def prepare_params(dw_w, dwd_w, ln_g, ln_b, pt_w, pt_b, w5, b5, w3, b3, L, B):
    C = dw_w.shape[0]
    C_out = w5.shape[0]
    L_out = (L - 1) // 2 + 1
    R = 2 if B % 2 == 0 else 1                      # batch rows folded per grid step

    # Packed per-channel params: [3+3+1+1+1, C]
    packed = jnp.concatenate([
        dw_w[:, 0, :].T,                            # [3, C]  dw taps  (x[l-1], x[l], x[l+1])
        dwd_w[:, 0, :].T,                           # [3, C]  dwd taps (y[l-3], y[l], y[l+3])
        ln_g.reshape(1, C),
        ln_b.reshape(1, C),
        pt_b.reshape(1, C),
    ], axis=0)                                      # [9, C]

    # Combined 5-tap weights: output row lo reads h[2*lo + t - 2] for tap t in 0..4.
    #   stridec (k=5, pad=2): tap t uses W5[..., t]
    #   c1      (k=3, pad=1): tap t uses W3[..., t-1] for t in 1..3
    taps = []
    for t in range(5):
        wt = w5[:, :, t].T                          # [C, C_out]
        if 1 <= t <= 3:
            wt = wt + w3[:, :, t - 1].T
        taps.append(wt)
    wc = jnp.concatenate(taps, axis=1)              # [C, 5*C_out]

    # 0/1 gather matrix over the [R*L, C] folded slab:
    # row (t*R*L_out + r*L_out + lo) picks h row (r*L + 2*lo + t - 2), zero if OOB.
    sel = np.zeros((5 * R * L_out, R * L), np.float32)
    for t in range(5):
        for r in range(R):
            for lo in range(L_out):
                l = 2 * lo + t - 2
                if 0 <= l < L:
                    sel[t * R * L_out + r * L_out + lo, r * L + l] = 1.0

    return {
        "rows_per_step": R,
        "packed": packed,                           # [9, C]
        "wp": pt_w[:, :, 0].T,                      # [C_in, C_out] of the 1x1 conv
        "wc": wc,                                   # [C, 5*C_out]
        "bc": (b5 + b3).reshape(1, C_out),          # [1, C_out]
        "sel": jnp.asarray(sel),                    # [5*R*L_out, R*L]
    }


# -------------------- plain-JAX reference (PyTorch semantics) ----------------
def ref_forward(x, dw_w, dwd_w, ln_g, ln_b, pt_w, pt_b, w5, b5, w3, b3):
    B, C, L = x.shape
    dn = ("NCH", "OIH", "NCH")

    def conv(inp, wgt, stride, pad, dil=1, groups=1):
        return lax.conv_general_dilated(
            inp, wgt, window_strides=(stride,), padding=[(pad, pad)],
            rhs_dilation=(dil,), dimension_numbers=dn,
            feature_group_count=groups, precision=lax.Precision.HIGHEST)

    y = conv(x, dw_w, 1, 1, 1, C)                   # depthwise k=3 pad=1
    y = conv(y, dwd_w, 1, 3, 3, C)                  # depthwise k=3 dil=3 pad=3
    yt = jnp.transpose(y, (0, 2, 1))
    mu = jnp.mean(yt, -1, keepdims=True)
    var = jnp.mean((yt - mu) ** 2, -1, keepdims=True)
    yt = (yt - mu) / jnp.sqrt(var + LN_EPS) * ln_g + ln_b
    y = jnp.transpose(yt, (0, 2, 1))
    h = conv(y, pt_w, 1, 0) + pt_b[None, :, None] + x
    o5 = conv(h, w5, 2, 2) + b5[None, :, None]
    o3 = conv(h, w3, 2, 1) + b3[None, :, None]
    return o5 + o3


# ------------------------------------ main -----------------------------------
if __name__ == "__main__":
    B, C, C_out, L = 2, 64, 128, 64                 # x: [B, C, L];  L_out = 32

    key = jax.random.PRNGKey(0)
    ks = jax.random.split(key, 11)
    sc = 0.1
    dw_w = jax.random.normal(ks[0], (C, 1, 3), jnp.float32) * sc     # torch [C, 1, 3]
    dwd_w = jax.random.normal(ks[1], (C, 1, 3), jnp.float32) * sc
    ln_g = 1.0 + 0.1 * jax.random.normal(ks[2], (C,), jnp.float32)
    ln_b = 0.1 * jax.random.normal(ks[3], (C,), jnp.float32)
    pt_w = jax.random.normal(ks[4], (C, C, 1), jnp.float32) * sc     # torch [C, C, 1]
    pt_b = jax.random.normal(ks[5], (C,), jnp.float32) * sc
    w5 = jax.random.normal(ks[6], (C_out, C, 5), jnp.float32) * sc   # torch [Cout, C, 5]
    b5 = jax.random.normal(ks[7], (C_out,), jnp.float32) * sc
    w3 = jax.random.normal(ks[8], (C_out, C, 3), jnp.float32) * sc   # torch [Cout, C, 3]
    b3 = jax.random.normal(ks[9], (C_out,), jnp.float32) * sc
    x = jax.random.normal(ks[10], (B, C, L), jnp.float32)

    params = prepare_params(dw_w, dwd_w, ln_g, ln_b, pt_w, pt_b, w5, b5, w3, b3, L, B)

    out = jax.block_until_ready(downsample(x, params))
    ref = jax.block_until_ready(
        ref_forward(x, dw_w, dwd_w, ln_g, ln_b, pt_w, pt_b, w5, b5, w3, b3))

    np.testing.assert_allclose(np.asarray(out), np.asarray(ref), rtol=1e-4, atol=1e-4)
    print("KERNEL_OK")
</pallas_src>

<mosaic_0001>
module attributes {stable_mosaic.version = 11 : i64} {
  func.func @downsample_kernel(%arg0: i32, %arg1: memref<128x64xf32, #tpu.memory_space<vmem>>, %arg2: memref<9x64xf32, #tpu.memory_space<vmem>>, %arg3: memref<64x64xf32, #tpu.memory_space<vmem>>, %arg4: memref<64x640xf32, #tpu.memory_space<vmem>>, %arg5: memref<1x128xf32, #tpu.memory_space<vmem>>, %arg6: memref<320x128xf32, #tpu.memory_space<vmem>>, %arg7: memref<64x128xf32, #tpu.memory_space<vmem>>) attributes {dimension_semantics = [#tpu.dimension_semantics<parallel>], iteration_bounds = array<i64: 1>, scalar_prefetch = 0 : i64, scratch_operands = 0 : i64, tpu.core_type = #tpu.core_type<tc>, window_params = [{transform_indices = @transform_0, window_bounds = array<i64: 128, 64>}, {pipeline_mode = #tpu.pipeline_mode<synchronous>, transform_indices = @transform_1, window_bounds = array<i64: 9, 64>}, {pipeline_mode = #tpu.pipeline_mode<synchronous>, transform_indices = @transform_2, window_bounds = array<i64: 64, 64>}, {pipeline_mode = #tpu.pipeline_mode<synchronous>, transform_indices = @transform_3, window_bounds = array<i64: 64, 640>}, {pipeline_mode = #tpu.pipeline_mode<synchronous>, transform_indices = @transform_4, window_bounds = array<i64: 1, 128>}, {pipeline_mode = #tpu.pipeline_mode<synchronous>, transform_indices = @transform_5, window_bounds = array<i64: 320, 128>}, {transform_indices = @transform_6, window_bounds = array<i64: 64, 128>}]} {
    %c0 = arith.constant 0 : index
    %c0_0 = arith.constant 0 : index
    %0 = vector.load %arg1[%c0, %c0_0] : memref<128x64xf32, #tpu.memory_space<vmem>>, vector<128x64xf32>
    %c0_1 = arith.constant 0 : index
    %c0_2 = arith.constant 0 : index
    %1 = vector.load %arg2[%c0_1, %c0_2] : memref<9x64xf32, #tpu.memory_space<vmem>>, vector<9x64xf32>
    %2 = vector.extract_strided_slice %1 {offsets = [0, 0], sizes = [1, 64], strides = [1, 1]} : vector<9x64xf32> to vector<1x64xf32>
    %3 = vector.extract_strided_slice %1 {offsets = [1, 0], sizes = [1, 64], strides = [1, 1]} : vector<9x64xf32> to vector<1x64xf32>
    %4 = vector.extract_strided_slice %1 {offsets = [2, 0], sizes = [1, 64], strides = [1, 1]} : vector<9x64xf32> to vector<1x64xf32>
    %5 = vector.extract_strided_slice %1 {offsets = [3, 0], sizes = [1, 64], strides = [1, 1]} : vector<9x64xf32> to vector<1x64xf32>
    %6 = vector.extract_strided_slice %1 {offsets = [4, 0], sizes = [1, 64], strides = [1, 1]} : vector<9x64xf32> to vector<1x64xf32>
    %7 = vector.extract_strided_slice %1 {offsets = [5, 0], sizes = [1, 64], strides = [1, 1]} : vector<9x64xf32> to vector<1x64xf32>
    %8 = vector.extract_strided_slice %1 {offsets = [6, 0], sizes = [1, 64], strides = [1, 1]} : vector<9x64xf32> to vector<1x64xf32>
    %9 = vector.extract_strided_slice %1 {offsets = [7, 0], sizes = [1, 64], strides = [1, 1]} : vector<9x64xf32> to vector<1x64xf32>
    %10 = vector.extract_strided_slice %1 {offsets = [8, 0], sizes = [1, 64], strides = [1, 1]} : vector<9x64xf32> to vector<1x64xf32>
    %11 = tpu.iota {dimensions = array<i32: 0>} : vector<128x64xi32>
    %c64_i32 = arith.constant 64 : i32
    %c0_i32 = arith.constant 0 : i32
    %12 = arith.cmpi eq, %c64_i32, %c0_i32 : i32
    %c1_i32 = arith.constant 1 : i32
    %13 = arith.select %12, %c1_i32, %c64_i32 : i32
    %14 = vector.broadcast %13 : i32 to vector<128x64xi32>
    %15 = arith.remsi %11, %14 : vector<128x64xi32>
    %c0_i32_3 = arith.constant 0 : i32
    %16 = vector.broadcast %c0_i32_3 : i32 to vector<128x64xi32>
    %17 = arith.cmpi ne, %15, %16 : vector<128x64xi32>
    %c0_i32_4 = arith.constant 0 : i32
    %18 = vector.broadcast %c0_i32_4 : i32 to vector<128x64xi32>
    %19 = arith.cmpi slt, %15, %18 : vector<128x64xi32>
    %c0_i32_5 = arith.constant 0 : i32
    %20 = arith.cmpi slt, %13, %c0_i32_5 : i32
    %21 = vector.broadcast %20 : i1 to vector<128x64xi1>
    %22 = vector.broadcast %21 : vector<128x64xi1> to vector<128x64xi1>
    %23 = arith.xori %19, %22 : vector<128x64xi1>
    %24 = arith.andi %23, %17 : vector<128x64xi1>
    %25 = vector.broadcast %13 : i32 to vector<128x64xi32>
    %26 = arith.addi %15, %25 : vector<128x64xi32>
    %27 = arith.select %24, %26, %15 : vector<128x64xi1>, vector<128x64xi32>
    %c1_i32_6 = arith.constant 1 : i32
    %28 = vector.broadcast %c1_i32_6 : i32 to vector<128x64xi32>
    %29 = arith.cmpi sge, %27, %28 : vector<128x64xi32>
    %c1_i32_7 = arith.constant 1 : i32
    %30 = tpu.dynamic_rotate %0 by %c1_i32_7 dim 0 : vector<128x64xf32>, i32 -> vector<128x64xf32>
    %cst = arith.constant 0.000000e+00 : f32
    %31 = vector.broadcast %cst : f32 to vector<128x64xf32>
    %32 = arith.select %29, %30, %31 : vector<128x64xi1>, vector<128x64xf32>
    %c62_i32 = arith.constant 62 : i32
    %33 = vector.broadcast %c62_i32 : i32 to vector<128x64xi32>
    %34 = arith.cmpi sle, %27, %33 : vector<128x64xi32>
    %c127_i32 = arith.constant 127 : i32
    %35 = tpu.dynamic_rotate %0 by %c127_i32 dim 0 : vector<128x64xf32>, i32 -> vector<128x64xf32>
    %cst_8 = arith.constant 0.000000e+00 : f32
    %36 = vector.broadcast %cst_8 : f32 to vector<128x64xf32>
    %37 = arith.select %34, %35, %36 : vector<128x64xi1>, vector<128x64xf32>
    %38 = vector.broadcast %2 : vector<1x64xf32> to vector<128x64xf32>
    %39 = arith.mulf %38, %32 : vector<128x64xf32>
    %40 = vector.broadcast %3 : vector<1x64xf32> to vector<128x64xf32>
    %41 = arith.mulf %40, %0 : vector<128x64xf32>
    %42 = arith.addf %39, %41 : vector<128x64xf32>
    %43 = vector.broadcast %4 : vector<1x64xf32> to vector<128x64xf32>
    %44 = arith.mulf %43, %37 : vector<128x64xf32>
    %45 = arith.addf %42, %44 : vector<128x64xf32>
    %c3_i32 = arith.constant 3 : i32
    %46 = vector.broadcast %c3_i32 : i32 to vector<128x64xi32>
    %47 = arith.cmpi sge, %27, %46 : vector<128x64xi32>
    %c3_i32_9 = arith.constant 3 : i32
    %48 = tpu.dynamic_rotate %45 by %c3_i32_9 dim 0 : vector<128x64xf32>, i32 -> vector<128x64xf32>
    %cst_10 = arith.constant 0.000000e+00 : f32
    %49 = vector.broadcast %cst_10 : f32 to vector<128x64xf32>
    %50 = arith.select %47, %48, %49 : vector<128x64xi1>, vector<128x64xf32>
    %c60_i32 = arith.constant 60 : i32
    %51 = vector.broadcast %c60_i32 : i32 to vector<128x64xi32>
    %52 = arith.cmpi sle, %27, %51 : vector<128x64xi32>
    %c125_i32 = arith.constant 125 : i32
    %53 = tpu.dynamic_rotate %45 by %c125_i32 dim 0 : vector<128x64xf32>, i32 -> vector<128x64xf32>
    %cst_11 = arith.constant 0.000000e+00 : f32
    %54 = vector.broadcast %cst_11 : f32 to vector<128x64xf32>
    %55 = arith.select %52, %53, %54 : vector<128x64xi1>, vector<128x64xf32>
    %56 = vector.broadcast %5 : vector<1x64xf32> to vector<128x64xf32>
    %57 = arith.mulf %56, %50 : vector<128x64xf32>
    %58 = vector.broadcast %6 : vector<1x64xf32> to vector<128x64xf32>
    %59 = arith.mulf %58, %45 : vector<128x64xf32>
    %60 = arith.addf %57, %59 : vector<128x64xf32>
    %61 = vector.broadcast %7 : vector<1x64xf32> to vector<128x64xf32>
    %62 = arith.mulf %61, %55 : vector<128x64xf32>
    %63 = arith.addf %60, %62 : vector<128x64xf32>
    %cst_12 = arith.constant dense<0.000000e+00> : vector<128xf32>
    %64 = vector.multi_reduction <add>, %63, %cst_12 [1] : vector<128x64xf32> to vector<128xf32>
    %65 = vector.shape_cast %64 : vector<128xf32> to vector<128x1xf32>
    %cst_13 = arith.constant 1.562500e-02 : f32
    %66 = vector.broadcast %cst_13 : f32 to vector<128x1xf32>
    %67 = arith.mulf %65, %66 : vector<128x1xf32>
    %68 = arith.mulf %63, %63 : vector<128x64xf32>
    %cst_14 = arith.constant dense<0.000000e+00> : vector<128xf32>
    %69 = vector.multi_reduction <add>, %68, %cst_14 [1] : vector<128x64xf32> to vector<128xf32>
    %70 = vector.shape_cast %69 : vector<128xf32> to vector<128x1xf32>
    %cst_15 = arith.constant 1.562500e-02 : f32
    %71 = vector.broadcast %cst_15 : f32 to vector<128x1xf32>
    %72 = arith.mulf %70, %71 : vector<128x1xf32>
    %73 = arith.mulf %67, %67 : vector<128x1xf32>
    %74 = arith.subf %72, %73 : vector<128x1xf32>
    %75 = vector.broadcast %67 : vector<128x1xf32> to vector<128x64xf32>
    %76 = arith.subf %63, %75 : vector<128x64xf32>
    %cst_16 = arith.constant 9.99999997E-7 : f32
    %77 = vector.broadcast %cst_16 : f32 to vector<128x1xf32>
    %78 = arith.addf %74, %77 : vector<128x1xf32>
    %79 = math.rsqrt %78 : vector<128x1xf32>
    %80 = vector.broadcast %79 : vector<128x1xf32> to vector<128x64xf32>
    %81 = arith.mulf %76, %80 : vector<128x64xf32>
    %82 = vector.broadcast %8 : vector<1x64xf32> to vector<128x64xf32>
    %83 = arith.mulf %81, %82 : vector<128x64xf32>
    %84 = vector.broadcast %9 : vector<1x64xf32> to vector<128x64xf32>
    %85 = arith.addf %83, %84 : vector<128x64xf32>
    %c0_17 = arith.constant 0 : index
    %c0_18 = arith.constant 0 : index
    %86 = vector.load %arg3[%c0_17, %c0_18] : memref<64x64xf32, #tpu.memory_space<vmem>>, vector<64x64xf32>
    %cst_19 = arith.constant dense<0.000000e+00> : vector<128x64xf32>
    %87 = tpu.matmul %85, %86, %cst_19 {dimension_numbers = #tpu.dot_dimension_numbers<[1], [0], [0], [1], [0, 0, 1, 1], [], []>} : vector<128x64xf32>, vector<64x64xf32>, vector<128x64xf32> -> vector<128x64xf32>
    %88 = vector.broadcast %10 : vector<1x64xf32> to vector<128x64xf32>
    %89 = arith.addf %87, %88 : vector<128x64xf32>
    %90 = arith.addf %89, %0 : vector<128x64xf32>
    %c0_20 = arith.constant 0 : index
    %c0_21 = arith.constant 0 : index
    %91 = vector.load %arg6[%c0_20, %c0_21] : memref<320x128xf32, #tpu.memory_space<vmem>>, vector<320x128xf32>
    %cst_22 = arith.constant dense<0.000000e+00> : vector<320x64xf32>
    %92 = tpu.matmul %91, %90, %cst_22 {dimension_numbers = #tpu.dot_dimension_numbers<[1], [0], [0], [1], [0, 0, 1, 1], [], []>} : vector<320x128xf32>, vector<128x64xf32>, vector<320x64xf32> -> vector<320x64xf32>
    %c0_23 = arith.constant 0 : index
    %c0_24 = arith.constant 0 : index
    %93 = vector.load %arg4[%c0_23, %c0_24] : memref<64x640xf32, #tpu.memory_space<vmem>>, vector<64x640xf32>
    %cst_25 = arith.constant dense<0.000000e+00> : vector<320x640xf32>
    %94 = tpu.matmul %92, %93, %cst_25 {dimension_numbers = #tpu.dot_dimension_numbers<[1], [0], [0], [1], [0, 0, 1, 1], [], []>} : vector<320x64xf32>, vector<64x640xf32>, vector<320x640xf32> -> vector<320x640xf32>
    %95 = vector.extract_strided_slice %94 {offsets = [0, 0], sizes = [64, 128], strides = [1, 1]} : vector<320x640xf32> to vector<64x128xf32>
    %96 = vector.extract_strided_slice %94 {offsets = [64, 128], sizes = [64, 128], strides = [1, 1]} : vector<320x640xf32> to vector<64x128xf32>
    %97 = arith.addf %95, %96 : vector<64x128xf32>
    %98 = vector.extract_strided_slice %94 {offsets = [128, 256], sizes = [64, 128], strides = [1, 1]} : vector<320x640xf32> to vector<64x128xf32>
    %99 = vector.extract_strided_slice %94 {offsets = [192, 384], sizes = [64, 128], strides = [1, 1]} : vector<320x640xf32> to vector<64x128xf32>
    %100 = arith.addf %98, %99 : vector<64x128xf32>
    %101 = arith.addf %97, %100 : vector<64x128xf32>
    %102 = vector.extract_strided_slice %94 {offsets = [256, 512], sizes = [64, 128], strides = [1, 1]} : vector<320x640xf32> to vector<64x128xf32>
    %103 = arith.addf %101, %102 : vector<64x128xf32>
    %c0_26 = arith.constant 0 : index
    %c0_27 = arith.constant 0 : index
    %104 = vector.load %arg5[%c0_26, %c0_27] : memref<1x128xf32, #tpu.memory_space<vmem>>, vector<1x128xf32>
    %105 = vector.broadcast %104 : vector<1x128xf32> to vector<64x128xf32>
    %106 = arith.addf %103, %105 : vector<64x128xf32>
    %c0_28 = arith.constant 0 : index
    %c0_29 = arith.constant 0 : index
    %107 = vector.load %arg7[%c0_28, %c0_29] : memref<64x128xf32, #tpu.memory_space<vmem>>, vector<64x128xf32>
    tpu.vector_store %arg7[%c0_28, %c0_29], %106 {strides = array<i32>} : memref<64x128xf32, #tpu.memory_space<vmem>>, vector<64x128xf32>,
    return
  }
  func.func @transform_0(%arg0: i32) -> (i32, i32) {
    %c0_i32 = arith.constant 0 : i32
    %c0_i32_0 = arith.constant 0 : i32
    return %arg0, %c0_i32 : i32, i32
  }
  func.func @transform_1(%arg0: i32) -> (i32, i32) {
    %c0_i32 = arith.constant 0 : i32
    %c0_i32_0 = arith.constant 0 : i32
    %c0_i32_1 = arith.constant 0 : i32
    return %c0_i32, %c0_i32_0 : i32, i32
  }
  func.func @transform_2(%arg0: i32) -> (i32, i32) {
    %c0_i32 = arith.constant 0 : i32
    %c0_i32_0 = arith.constant 0 : i32
    %c0_i32_1 = arith.constant 0 : i32
    return %c0_i32, %c0_i32_0 : i32, i32
  }
  func.func @transform_3(%arg0: i32) -> (i32, i32) {
    %c0_i32 = arith.constant 0 : i32
    %c0_i32_0 = arith.constant 0 : i32
    %c0_i32_1 = arith.constant 0 : i32
    return %c0_i32, %c0_i32_0 : i32, i32
  }
  func.func @transform_4(%arg0: i32) -> (i32, i32) {
    %c0_i32 = arith.constant 0 : i32
    %c0_i32_0 = arith.constant 0 : i32
    %c0_i32_1 = arith.constant 0 : i32
    return %c0_i32, %c0_i32_0 : i32, i32
  }
  func.func @transform_5(%arg0: i32) -> (i32, i32) {
    %c0_i32 = arith.constant 0 : i32
    %c0_i32_0 = arith.constant 0 : i32
    %c0_i32_1 = arith.constant 0 : i32
    return %c0_i32, %c0_i32_0 : i32, i32
  }
  func.func @transform_6(%arg0: i32) -> (i32, i32) {
    %c0_i32 = arith.constant 0 : i32
    %c0_i32_0 = arith.constant 0 : i32
    return %arg0, %c0_i32 : i32, i32
  }
}

</mosaic_0001>

<llo_original>
// kernel: tpu_custom_call.1
$region0: #{tpu_custom_call.1}
  #allocation0 [shape = 'u32[]', space=smem, size = 0x4, offset = 0x4, fixed_abs, tag = 'smem constant byte address 0x4 - core index']
  #allocation1 [shape = 'u32[144,128]{1,0:T(1,128)}', space=vmem, size = 0x12000, scoped, tag = 'internal scratch']
  %s0 = inlined_call_operand.vmem [shape: f32[128,64], index: 0, kind: input, shape index: {}]
  %s1 = inlined_call_operand.vmem [shape: f32[9,64], index: 1, kind: input, shape index: {}]
  %s2 = inlined_call_operand.vmem [shape: f32[64,64], index: 2, kind: input, shape index: {}]
  %s3 = inlined_call_operand.hbm [shape: f32[64,640], index: 3, kind: input, shape index: {}]
  %s4 = inlined_call_operand.vmem [shape: f32[1,128], index: 4, kind: input, shape index: {}]
  %s5 = inlined_call_operand.hbm [shape: f32[320,128], index: 5, kind: input, shape index: {}]
  %s6 = inlined_call_operand.hbm [shape: f32[64,128], index: 6, kind: output, shape index: {}]
  %s7 = sld [smem:[#allocation0]]
  $region42: #{tpu_custom_call.1} parent=0
    _
  %s9 = ssub.s32 1, %s7
  %s10 = scalar_select 0, %s9, %s7
  $region1: #{tpu_custom_call.1} parent=0
    #allocation2 [shape = 'u8[163840]{0}', space=vmem, size = 0x28000, scoped, tag = 'input window, operand 3, single buffered']
    #allocation3 [shape = 's32[1]{0}', space=sflag, size = 0x4, scoped, tag = 'scoped memory for tpu_custom_call.1']
    #allocation4 [shape = 's32[1]{0}', space=sflag, size = 0x4, scoped, tag = 'scoped memory for tpu_custom_call.1']
    #allocation5 [shape = 'u8[163840]{0}', space=vmem, size = 0x28000, scoped, tag = 'input window, operand 5, single buffered']
    #allocation6 [shape = 's32[1]{0}', space=sflag, size = 0x4, scoped, tag = 'scoped memory for tpu_custom_call.1']
    #allocation7 [shape = 'u8[32768]{0}', space=vmem, size = 0x8000, scoped, tag = 'output window, operand 0, single buffered']
    %11 = vsyncpa [#allocation3], 0
    %12 = vsyncpa [#allocation6], 0
    %13 = vsyncpa [#allocation4], 0
    // Predicated region
    $region2: #{tpu_custom_call.1} parent=1 // pred_check
      _
    $region3: #{tpu_custom_call.1} parent=1 // pred_check_branch
      %15 = sbr.rel (0) target = $region5
    $region4: #{tpu_custom_call.1} parent=1 // pred_region
      _
    $region5: #{tpu_custom_call.1} parent=1 // pred_fallthru
      _
    // Predicated region
    $region6: #{tpu_custom_call.1} parent=1 // pred_check
      _
    $region7: #{tpu_custom_call.1} parent=1 // pred_check_branch
      %17 = sbr.rel (0) target = $region9
    $region8: #{tpu_custom_call.1} parent=1 // pred_region
      _
    $region9: #{tpu_custom_call.1} parent=1 // pred_fallthru
      _
    // Predicated region
    $region10: #{tpu_custom_call.1} parent=1 // pred_check
      _
    $region11: #{tpu_custom_call.1} parent=1 // pred_check_branch
      %19 = sbr.rel (0) target = $region13
    $region12: #{tpu_custom_call.1} parent=1 // pred_region
      _
    $region13: #{tpu_custom_call.1} parent=1 // pred_fallthru
      _
    // Predicated region
    $region14: #{tpu_custom_call.1} parent=1 // pred_check
      _
    $region15: #{tpu_custom_call.1} parent=1 // pred_check_branch
      %21 = sbr.rel (0) target = $region17
    $region16: #{tpu_custom_call.1} parent=1 // pred_region
      %s23 = ssub.s32 5120, 5120
      %24 = vsyncadd [#allocation3], %s23
      %s25 = sshll.u32 [#allocation2], 4
      %s26 = int_to_ptr.vmem [resolvable:$true] %s25
      %31 = dma.hbm_to_vmem [thread:$0]  %s3, 5120, %s26, [#allocation3], 640, 640, 40
    $region17: #{tpu_custom_call.1} parent=1 // pred_fallthru
      _
    // Predicated region
    $region18: #{tpu_custom_call.1} parent=1 // pred_check
      _
    $region19: #{tpu_custom_call.1} parent=1 // pred_check_branch
      %33 = sbr.rel (0) target = $region21
    $region20: #{tpu_custom_call.1} parent=1 // pred_region
      _
    $region21: #{tpu_custom_call.1} parent=1 // pred_fallthru
      _
    // Predicated region
    $region22: #{tpu_custom_call.1} parent=1 // pred_check
      _
    $region23: #{tpu_custom_call.1} parent=1 // pred_check_branch
      %35 = sbr.rel (0) target = $region25
    $region24: #{tpu_custom_call.1} parent=1 // pred_region
      %s37 = ssub.s32 5120, 5120
      %38 = vsyncadd [#allocation6], %s37
      %s39 = sshll.u32 [#allocation5], 4
      %s40 = int_to_ptr.vmem [resolvable:$true] %s39
      %45 = dma.hbm_to_vmem [thread:$0]  %s5, 5120, %s40, [#allocation6], 128, 128, 8
    $region25: #{tpu_custom_call.1} parent=1 // pred_fallthru
      _
    // Predicated region
    $region26: #{tpu_custom_call.1} parent=1 // pred_check
      _
    $region27: #{tpu_custom_call.1} parent=1 // pred_check_branch
      %47 = sbr.rel (0) target = $region29
    $region28: #{tpu_custom_call.1} parent=1 // pred_region
      %48 = dma.done [#allocation3], 5120
    $region29: #{tpu_custom_call.1} parent=1 // pred_fallthru
      _
    // Predicated region
    $region30: #{tpu_custom_call.1} parent=1 // pred_check
      _
    $region31: #{tpu_custom_call.1} parent=1 // pred_check_branch
      %50 = sbr.rel (0) target = $region33
    $region32: #{tpu_custom_call.1} parent=1 // pred_region
      %51 = dma.done [#allocation6], 5120
    $region33: #{tpu_custom_call.1} parent=1 // pred_fallthru
      _
    %v52 = vld [vmem:[%s0] sm:$0xff]
    %v53 = vld [vmem:[%s0 + $0x8] sm:$0xff]
    %v54 = vld [vmem:[%s0 + $0x10] sm:$0xff]
    %v55 = vld [vmem:[%s0 + $0x18] sm:$0xff]
    %v56 = vld [vmem:[%s0 + $0x20] sm:$0xff]
    %v57 = vld [vmem:[%s0 + $0x28] sm:$0xff]
    %v58 = vld [vmem:[%s0 + $0x30] sm:$0xff]
    %v59 = vld [vmem:[%s0 + $0x38] sm:$0xff]
    %v60 = vld [vmem:[%s0 + $0x40] sm:$0xff]
    %v61 = vld [vmem:[%s0 + $0x48] sm:$0xff]
    %v62 = vld [vmem:[%s0 + $0x50] sm:$0xff]
    %v63 = vld [vmem:[%s0 + $0x58] sm:$0xff]
    %v64 = vld [vmem:[%s0 + $0x60] sm:$0xff]
    %v65 = vld [vmem:[%s0 + $0x68] sm:$0xff]
    %v66 = vld [vmem:[%s0 + $0x70] sm:$0xff]
    %v67 = vld [vmem:[%s0 + $0x78] sm:$0xff]
    %v68 = vld [vmem:[%s1] sm:$0xff]
    %v69 = vld [vmem:[%s1 + $0x8] sm:$0x1]
    %v70 = vlaneseq
    %v71 = vshrl.u32 %v70, 7
    %v72 = vadd.s32 %v71, 8
    %v73 = vadd.s32 %v71, 16
    %v74 = vadd.s32 %v71, 24
    %v75 = vadd.s32 %v71, 32
    %v76 = vadd.s32 %v71, 40
    %v77 = vadd.s32 %v71, 48
    %v78 = vadd.s32 %v71, 56
    %v79 = vadd.s32 %v71, 64
    %v80 = vadd.s32 %v71, 72
    %v81 = vadd.s32 %v71, 80
    %v82 = vadd.s32 %v71, 88
    %v83 = vadd.s32 %v71, 96
    %v84 = vadd.s32 %v71, 104
    %v85 = vadd.s32 %v71, 112
    %v86 = vadd.s32 %v71, 120
    %vm87 = vcmp.lt.s32.totalorder %v71, 0
    %v88 = vsub.s32 0, %v71
    %v89 = vsel %vm87, %v88, %v71
    %v90 = vshrl.u32 %v89, 6
    %v91 = vand.u32 %v89, 63
    %v92 = vsub.s32 0, %v91
    %v93 = vsel %vm87, %v92, %v91
    %vm94 = vcmp.lt.s32.totalorder %v72, 0
    %v95 = vsub.s32 0, %v72
    %v96 = vsel %vm94, %v95, %v72
    %v97 = vshrl.u32 %v96, 6
    %v98 = vand.u32 %v96, 63
    %v99 = vsub.s32 0, %v98
    %v100 = vsel %vm94, %v99, %v98
    %vm101 = vcmp.lt.s32.totalorder %v73, 0
    %v102 = vsub.s32 0, %v73
    %v103 = vsel %vm101, %v102, %v73
    %v104 = vshrl.u32 %v103, 6
    %v105 = vand.u32 %v103, 63
    %v106 = vsub.s32 0, %v105
    %v107 = vsel %vm101, %v106, %v105
    %vm108 = vcmp.lt.s32.totalorder %v74, 0
    %v109 = vsub.s32 0, %v74
    %v110 = vsel %vm108, %v109, %v74
    %v111 = vshrl.u32 %v110, 6
    %v112 = vand.u32 %v110, 63
    %v113 = vsub.s32 0, %v112
    %v114 = vsel %vm108, %v113, %v112
    %vm115 = vcmp.lt.s32.totalorder %v75, 0
    %v116 = vsub.s32 0, %v75
    %v117 = vsel %vm115, %v116, %v75
    %v118 = vshrl.u32 %v117, 6
    %v119 = vand.u32 %v117, 63
    %v120 = vsub.s32 0, %v119
    %v121 = vsel %vm115, %v120, %v119
    %vm122 = vcmp.lt.s32.totalorder %v76, 0
    %v123 = vsub.s32 0, %v76
    %v124 = vsel %vm122, %v123, %v76
    %v125 = vshrl.u32 %v124, 6
    %v126 = vand.u32 %v124, 63
    %v127 = vsub.s32 0, %v126
    %v128 = vsel %vm122, %v127, %v126
    %vm129 = vcmp.lt.s32.totalorder %v77, 0
    %v130 = vsub.s32 0, %v77
    %v131 = vsel %vm129, %v130, %v77
    %v132 = vshrl.u32 %v131, 6
    %v133 = vand.u32 %v131, 63
    %v134 = vsub.s32 0, %v133
    %v135 = vsel %vm129, %v134, %v133
    %vm136 = vcmp.lt.s32.totalorder %v78, 0
    %v137 = vsub.s32 0, %v78
    %v138 = vsel %vm136, %v137, %v78
    %v139 = vshrl.u32 %v138, 6
    %v140 = vand.u32 %v138, 63
    %v141 = vsub.s32 0, %v140
    %v142 = vsel %vm136, %v141, %v140
    %vm143 = vcmp.lt.s32.totalorder %v79, 0
    %v144 = vsub.s32 0, %v79
    %v145 = vsel %vm143, %v144, %v79
    %v146 = vshrl.u32 %v145, 6
    %v147 = vand.u32 %v145, 63
    %v148 = vsub.s32 0, %v147
    %v149 = vsel %vm143, %v148, %v147
    %vm150 = vcmp.lt.s32.totalorder %v80, 0
    %v151 = vsub.s32 0, %v80
    %v152 = vsel %vm150, %v151, %v80
    %v153 = vshrl.u32 %v152, 6
    %v154 = vand.u32 %v152, 63
    %v155 = vsub.s32 0, %v154
    %v156 = vsel %vm150, %v155, %v154
    %vm157 = vcmp.lt.s32.totalorder %v81, 0
    %v158 = vsub.s32 0, %v81
    %v159 = vsel %vm157, %v158, %v81
    %v160 = vshrl.u32 %v159, 6
    %v161 = vand.u32 %v159, 63
    %v162 = vsub.s32 0, %v161
    %v163 = vsel %vm157, %v162, %v161
    %vm164 = vcmp.lt.s32.totalorder %v82, 0
    %v165 = vsub.s32 0, %v82
    %v166 = vsel %vm164, %v165, %v82
    %v167 = vshrl.u32 %v166, 6
    %v168 = vand.u32 %v166, 63
    %v169 = vsub.s32 0, %v168
    %v170 = vsel %vm164, %v169, %v168
    %vm171 = vcmp.lt.s32.totalorder %v83, 0
    %v172 = vsub.s32 0, %v83
    %v173 = vsel %vm171, %v172, %v83
    %v174 = vshrl.u32 %v173, 6
    %v175 = vand.u32 %v173, 63
    %v176 = vsub.s32 0, %v175
    %v177 = vsel %vm171, %v176, %v175
    %vm178 = vcmp.lt.s32.totalorder %v84, 0
    %v179 = vsub.s32 0, %v84
    %v180 = vsel %vm178, %v179, %v84
    %v181 = vshrl.u32 %v180, 6
    %v182 = vand.u32 %v180, 63
    %v183 = vsub.s32 0, %v182
    %v184 = vsel %vm178, %v183, %v182
    %vm185 = vcmp.lt.s32.totalorder %v85, 0
    %v186 = vsub.s32 0, %v85
    %v187 = vsel %vm185, %v186, %v85
    %v188 = vshrl.u32 %v187, 6
    %v189 = vand.u32 %v187, 63
    %v190 = vsub.s32 0, %v189
    %v191 = vsel %vm185, %v190, %v189
    %vm192 = vcmp.lt.s32.totalorder %v86, 0
    %v193 = vsub.s32 0, %v86
    %v194 = vsel %vm192, %v193, %v86
    %v195 = vshrl.u32 %v194, 6
    %v196 = vand.u32 %v194, 63
    %v197 = vsub.s32 0, %v196
    %v198 = vsel %vm192, %v197, %v196
    %vm199 = vcmp.ne.s32.totalorder %v93, 0
    %vm200 = vcmp.ne.s32.totalorder %v100, 0
    %vm201 = vcmp.ne.s32.totalorder %v107, 0
    %vm202 = vcmp.ne.s32.totalorder %v114, 0
    %vm203 = vcmp.ne.s32.totalorder %v121, 0
    %vm204 = vcmp.ne.s32.totalorder %v128, 0
    %vm205 = vcmp.ne.s32.totalorder %v135, 0
    %vm206 = vcmp.ne.s32.totalorder %v142, 0
    %vm207 = vcmp.ne.s32.totalorder %v149, 0
    %vm208 = vcmp.ne.s32.totalorder %v156, 0
    %vm209 = vcmp.ne.s32.totalorder %v163, 0
    %vm210 = vcmp.ne.s32.totalorder %v170, 0
    %vm211 = vcmp.ne.s32.totalorder %v177, 0
    %vm212 = vcmp.ne.s32.totalorder %v184, 0
    %vm213 = vcmp.ne.s32.totalorder %v191, 0
    %vm214 = vcmp.ne.s32.totalorder %v198, 0
    %vm215 = vcmp.lt.s32.totalorder %v93, 0
    %vm216 = vcmp.lt.s32.totalorder %v100, 0
    %vm217 = vcmp.lt.s32.totalorder %v107, 0
    %vm218 = vcmp.lt.s32.totalorder %v114, 0
    %vm219 = vcmp.lt.s32.totalorder %v121, 0
    %vm220 = vcmp.lt.s32.totalorder %v128, 0
    %vm221 = vcmp.lt.s32.totalorder %v135, 0
    %vm222 = vcmp.lt.s32.totalorder %v142, 0
    %vm223 = vcmp.lt.s32.totalorder %v149, 0
    %vm224 = vcmp.lt.s32.totalorder %v156, 0
    %vm225 = vcmp.lt.s32.totalorder %v163, 0
    %vm226 = vcmp.lt.s32.totalorder %v170, 0
    %vm227 = vcmp.lt.s32.totalorder %v177, 0
    %vm228 = vcmp.lt.s32.totalorder %v184, 0
    %vm229 = vcmp.lt.s32.totalorder %v191, 0
    %vm230 = vcmp.lt.s32.totalorder %v198, 0
    %vm231 = vmand %vm215, %vm199
    %vm232 = vmand %vm216, %vm200
    %vm233 = vmand %vm217, %vm201
    %vm234 = vmand %vm218, %vm202
    %vm235 = vmand %vm219, %vm203
    %vm236 = vmand %vm220, %vm204
    %vm237 = vmand %vm221, %vm205
    %vm238 = vmand %vm222, %vm206
    %vm239 = vmand %vm223, %vm207
    %vm240 = vmand %vm224, %vm208
    %vm241 = vmand %vm225, %vm209
    %vm242 = vmand %vm226, %vm210
    %vm243 = vmand %vm227, %vm211
    %vm244 = vmand %vm228, %vm212
    %vm245 = vmand %vm229, %vm213
    %vm246 = vmand %vm230, %vm214
    %v247 = vadd.s32 %v93, 64
    %v248 = vadd.s32 %v100, 64
    %v249 = vadd.s32 %v107, 64
    %v250 = vadd.s32 %v114, 64
    %v251 = vadd.s32 %v121, 64
    %v252 = vadd.s32 %v128, 64
    %v253 = vadd.s32 %v135, 64
    %v254 = vadd.s32 %v142, 64
    %v255 = vadd.s32 %v149, 64
    %v256 = vadd.s32 %v156, 64
    %v257 = vadd.s32 %v163, 64
    %v258 = vadd.s32 %v170, 64
    %v259 = vadd.s32 %v177, 64
    %v260 = vadd.s32 %v184, 64
    %v261 = vadd.s32 %v191, 64
    %v262 = vadd.s32 %v198, 64
    %v263 = vsel %vm231, %v247, %v93
    %v264 = vsel %vm232, %v248, %v100
    %v265 = vsel %vm233, %v249, %v107
    %v266 = vsel %vm234, %v250, %v114
    %v267 = vsel %vm235, %v251, %v121
    %v268 = vsel %vm236, %v252, %v128
    %v269 = vsel %vm237, %v253, %v135
    %v270 = vsel %vm238, %v254, %v142
    %v271 = vsel %vm239, %v255, %v149
    %v272 = vsel %vm240, %v256, %v156
    %v273 = vsel %vm241, %v257, %v163
    %v274 = vsel %vm242, %v258, %v170
    %v275 = vsel %vm243, %v259, %v177
    %v276 = vsel %vm244, %v260, %v184
    %v277 = vsel %vm245, %v261, %v191
    %v278 = vsel %vm246, %v262, %v198
    %vm279 = vcmp.ge.s32.totalorder %v263, 1
    %vm280 = vcmp.ge.s32.totalorder %v264, 1
    %vm281 = vcmp.ge.s32.totalorder %v265, 1
    %vm282 = vcmp.ge.s32.totalorder %v266, 1
    %vm283 = vcmp.ge.s32.totalorder %v267, 1
    %vm284 = vcmp.ge.s32.totalorder %v268, 1
    %vm285 = vcmp.ge.s32.totalorder %v269, 1
    %vm286 = vcmp.ge.s32.totalorder %v270, 1
    %vm287 = vcmp.ge.s32.totalorder %v271, 1
    %vm288 = vcmp.ge.s32.totalorder %v272, 1
    %vm289 = vcmp.ge.s32.totalorder %v273, 1
    %vm290 = vcmp.ge.s32.totalorder %v274, 1
    %vm291 = vcmp.ge.s32.totalorder %v275, 1
    %vm292 = vcmp.ge.s32.totalorder %v276, 1
    %vm293 = vcmp.ge.s32.totalorder %v277, 1
    %vm294 = vcmp.ge.s32.totalorder %v278, 1
    %v295 = vrot.slane %v52, 7
    %v296 = vrot.slane %v53, 7
    %v297 = vrot.slane %v54, 7
    %v298 = vrot.slane %v55, 7
    %v299 = vrot.slane %v56, 7
    %v300 = vrot.slane %v57, 7
    %v301 = vrot.slane %v58, 7
    %v302 = vrot.slane %v59, 7
    %v303 = vrot.slane %v60, 7
    %v304 = vrot.slane %v61, 7
    %v305 = vrot.slane %v62, 7
    %v306 = vrot.slane %v63, 7
    %v307 = vrot.slane %v64, 7
    %v308 = vrot.slane %v65, 7
    %v309 = vrot.slane %v66, 7
    %v310 = vrot.slane %v67, 7
    %vm311 = vcmp.lt.s32.totalorder %v71, 1
    %v312 = vsel %vm311, %v309, %v310
    %v313 = vsel %vm311, %v308, %v309
    %v314 = vsel %vm311, %v307, %v308
    %v315 = vsel %vm311, %v306, %v307
    %v316 = vsel %vm311, %v305, %v306
    %v317 = vsel %vm311, %v304, %v305
    %v318 = vsel %vm311, %v303, %v304
    %v319 = vsel %vm311, %v302, %v303
    %v320 = vsel %vm311, %v301, %v302
    %v321 = vsel %vm311, %v300, %v301
    %v322 = vsel %vm311, %v299, %v300
    %v323 = vsel %vm311, %v298, %v299
    %v324 = vsel %vm311, %v297, %v298
    %v325 = vsel %vm311, %v296, %v297
    %v326 = vsel %vm311, %v295, %v296
    %v327 = vsel %vm311, %v310, %v295
    %v328 = vsel %vm279, %v327, 0.0
    %v329 = vsel %vm280, %v326, 0.0
    %v330 = vsel %vm281, %v325, 0.0
    %v331 = vsel %vm282, %v324, 0.0
    %v332 = vsel %vm283, %v323, 0.0
    %v333 = vsel %vm284, %v322, 0.0
    %v334 = vsel %vm285, %v321, 0.0
    %v335 = vsel %vm286, %v320, 0.0
    %v336 = vsel %vm287, %v319, 0.0
    %v337 = vsel %vm288, %v318, 0.0
    %v338 = vsel %vm289, %v317, 0.0
    %v339 = vsel %vm290, %v316, 0.0
    %v340 = vsel %vm291, %v315, 0.0
    %v341 = vsel %vm292, %v314, 0.0
    %v342 = vsel %vm293, %v313, 0.0
    %v343 = vsel %vm294, %v312, 0.0
    %vm344 = vcmp.le.s32.totalorder %v263, 62
    %vm345 = vcmp.le.s32.totalorder %v264, 62
    %vm346 = vcmp.le.s32.totalorder %v265, 62
    %vm347 = vcmp.le.s32.totalorder %v266, 62
    %vm348 = vcmp.le.s32.totalorder %v267, 62
    %vm349 = vcmp.le.s32.totalorder %v268, 62
    %vm350 = vcmp.le.s32.totalorder %v269, 62
    %vm351 = vcmp.le.s32.totalorder %v270, 62
    %vm352 = vcmp.le.s32.totalorder %v271, 62
    %vm353 = vcmp.le.s32.totalorder %v272, 62
    %vm354 = vcmp.le.s32.totalorder %v273, 62
    %vm355 = vcmp.le.s32.totalorder %v274, 62
    %vm356 = vcmp.le.s32.totalorder %v275, 62
    %vm357 = vcmp.le.s32.totalorder %v276, 62
    %vm358 = vcmp.le.s32.totalorder %v277, 62
    %vm359 = vcmp.le.s32.totalorder %v278, 62
    %v360 = vrot.slane %v52, 1
    %v361 = vrot.slane %v53, 1
    %v362 = vrot.slane %v54, 1
    %v363 = vrot.slane %v55, 1
    %v364 = vrot.slane %v56, 1
    %v365 = vrot.slane %v57, 1
    %v366 = vrot.slane %v58, 1
    %v367 = vrot.slane %v59, 1
    %v368 = vrot.slane %v60, 1
    %v369 = vrot.slane %v61, 1
    %v370 = vrot.slane %v62, 1
    %v371 = vrot.slane %v63, 1
    %v372 = vrot.slane %v64, 1
    %v373 = vrot.slane %v65, 1
    %v374 = vrot.slane %v66, 1
    %v375 = vrot.slane %v67, 1
    %vm376 = vcmp.lt.s32.totalorder %v71, 7
    %v377 = vsel %vm376, %v374, %v375
    %v378 = vsel %vm376, %v373, %v374
    %v379 = vsel %vm376, %v372, %v373
    %v380 = vsel %vm376, %v371, %v372
    %v381 = vsel %vm376, %v370, %v371
    %v382 = vsel %vm376, %v369, %v370
    %v383 = vsel %vm376, %v368, %v369
    %v384 = vsel %vm376, %v367, %v368
    %v385 = vsel %vm376, %v366, %v367
    %v386 = vsel %vm376, %v365, %v366
    %v387 = vsel %vm376, %v364, %v365
    %v388 = vsel %vm376, %v363, %v364
    %v389 = vsel %vm376, %v362, %v363
    %v390 = vsel %vm376, %v361, %v362
    %v391 = vsel %vm376, %v360, %v361
    %v392 = vsel %vm376, %v375, %v360
    %v393 = vsel %vm344, %v391, 0.0
    %v394 = vsel %vm345, %v390, 0.0
    %v395 = vsel %vm346, %v389, 0.0
    %v396 = vsel %vm347, %v388, 0.0
    %v397 = vsel %vm348, %v387, 0.0
    %v398 = vsel %vm349, %v386, 0.0
    %v399 = vsel %vm350, %v385, 0.0
    %v400 = vsel %vm351, %v384, 0.0
    %v401 = vsel %vm352, %v383, 0.0
    %v402 = vsel %vm353, %v382, 0.0
    %v403 = vsel %vm354, %v381, 0.0
    %v404 = vsel %vm355, %v380, 0.0
    %v405 = vsel %vm356, %v379, 0.0
    %v406 = vsel %vm357, %v378, 0.0
    %v407 = vsel %vm358, %v377, 0.0
    %v408 = vsel %vm359, %v392, 0.0
    %v409 = vlaneseq
    %v410 = vshrl.u32 %v409, 7
    %v411 = vsub.s32 0, %v410
    %v412 = vrot.slane %v68, %v411
    %v413 = vmul.f32 %v412, %v328
    %v414 = vmul.f32 %v412, %v329
    %v415 = vmul.f32 %v412, %v330
    %v416 = vmul.f32 %v412, %v331
    %v417 = vmul.f32 %v412, %v332
    %v418 = vmul.f32 %v412, %v333
    %v419 = vmul.f32 %v412, %v334
    %v420 = vmul.f32 %v412, %v335
    %v421 = vmul.f32 %v412, %v336
    %v422 = vmul.f32 %v412, %v337
    %v423 = vmul.f32 %v412, %v338
    %v424 = vmul.f32 %v412, %v339
    %v425 = vmul.f32 %v412, %v340
    %v426 = vmul.f32 %v412, %v341
    %v427 = vmul.f32 %v412, %v342
    %v428 = vmul.f32 %v412, %v343
    %v429 = vlaneseq
    %v430 = vshrl.u32 %v429, 7
    %v431 = vsub.s32 1, %v430
    %v432 = vrot.slane %v68, %v431
    %v433 = vmul.f32 %v432, %v52
    %v434 = vmul.f32 %v432, %v53
    %v435 = vmul.f32 %v432, %v54
    %v436 = vmul.f32 %v432, %v55
    %v437 = vmul.f32 %v432, %v56
    %v438 = vmul.f32 %v432, %v57
    %v439 = vmul.f32 %v432, %v58
    %v440 = vmul.f32 %v432, %v59
    %v441 = vmul.f32 %v432, %v60
    %v442 = vmul.f32 %v432, %v61
    %v443 = vmul.f32 %v432, %v62
    %v444 = vmul.f32 %v432, %v63
    %v445 = vmul.f32 %v432, %v64
    %v446 = vmul.f32 %v432, %v65
    %v447 = vmul.f32 %v432, %v66
    %v448 = vmul.f32 %v432, %v67
    %v449 = vadd.f32 %v413, %v433
    %v450 = vadd.f32 %v414, %v434
    %v451 = vadd.f32 %v415, %v435
    %v452 = vadd.f32 %v416, %v436
    %v453 = vadd.f32 %v417, %v437
    %v454 = vadd.f32 %v418, %v438
    %v455 = vadd.f32 %v419, %v439
    %v456 = vadd.f32 %v420, %v440
    %v457 = vadd.f32 %v421, %v441
    %v458 = vadd.f32 %v422, %v442
    %v459 = vadd.f32 %v423, %v443
    %v460 = vadd.f32 %v424, %v444
    %v461 = vadd.f32 %v425, %v445
    %v462 = vadd.f32 %v426, %v446
    %v463 = vadd.f32 %v427, %v447
    %v464 = vadd.f32 %v428, %v448
    %v465 = vlaneseq
    %v466 = vshrl.u32 %v465, 7
    %v467 = vsub.s32 2, %v466
    %v468 = vrot.slane %v68, %v467
    %v469 = vmul.f32 %v468, %v393
    %v470 = vmul.f32 %v468, %v394
    %v471 = vmul.f32 %v468, %v395
    %v472 = vmul.f32 %v468, %v396
    %v473 = vmul.f32 %v468, %v397
    %v474 = vmul.f32 %v468, %v398
    %v475 = vmul.f32 %v468, %v399
    %v476 = vmul.f32 %v468, %v400
    %v477 = vmul.f32 %v468, %v401
    %v478 = vmul.f32 %v468, %v402
    %v479 = vmul.f32 %v468, %v403
    %v480 = vmul.f32 %v468, %v404
    %v481 = vmul.f32 %v468, %v405
    %v482 = vmul.f32 %v468, %v406
    %v483 = vmul.f32 %v468, %v407
    %v484 = vmul.f32 %v468, %v408
    %v485 = vadd.f32 %v449, %v469
    %v486 = vadd.f32 %v450, %v470
    %v487 = vadd.f32 %v451, %v471
    %v488 = vadd.f32 %v452, %v472
    %v489 = vadd.f32 %v453, %v473
    %v490 = vadd.f32 %v454, %v474
    %v491 = vadd.f32 %v455, %v475
    %v492 = vadd.f32 %v456, %v476
    %v493 = vadd.f32 %v457, %v477
    %v494 = vadd.f32 %v458, %v478
    %v495 = vadd.f32 %v459, %v479
    %v496 = vadd.f32 %v460, %v480
    %v497 = vadd.f32 %v461, %v481
    %v498 = vadd.f32 %v462, %v482
    %v499 = vadd.f32 %v463, %v483
    %v500 = vadd.f32 %v464, %v484
    %vm501 = vcmp.ge.s32.totalorder %v263, 3
    %vm502 = vcmp.ge.s32.totalorder %v264, 3
    %vm503 = vcmp.ge.s32.totalorder %v265, 3
    %vm504 = vcmp.ge.s32.totalorder %v266, 3
    %vm505 = vcmp.ge.s32.totalorder %v267, 3
    %vm506 = vcmp.ge.s32.totalorder %v268, 3
    %vm507 = vcmp.ge.s32.totalorder %v269, 3
    %vm508 = vcmp.ge.s32.totalorder %v270, 3
    %vm509 = vcmp.ge.s32.totalorder %v271, 3
    %vm510 = vcmp.ge.s32.totalorder %v272, 3
    %vm511 = vcmp.ge.s32.totalorder %v273, 3
    %vm512 = vcmp.ge.s32.totalorder %v274, 3
    %vm513 = vcmp.ge.s32.totalorder %v275, 3
    %vm514 = vcmp.ge.s32.totalorder %v276, 3
    %vm515 = vcmp.ge.s32.totalorder %v277, 3
    %vm516 = vcmp.ge.s32.totalorder %v278, 3
    %v517 = vrot.slane %v485, 5
    %v518 = vrot.slane %v486, 5
    %v519 = vrot.slane %v487, 5
    %v520 = vrot.slane %v488, 5
    %v521 = vrot.slane %v489, 5
    %v522 = vrot.slane %v490, 5
    %v523 = vrot.slane %v491, 5
    %v524 = vrot.slane %v492, 5
    %v525 = vrot.slane %v493, 5
    %v526 = vrot.slane %v494, 5
    %v527 = vrot.slane %v495, 5
    %v528 = vrot.slane %v496, 5
    %v529 = vrot.slane %v497, 5
    %v530 = vrot.slane %v498, 5
    %v531 = vrot.slane %v499, 5
    %v532 = vrot.slane %v500, 5
    %vm533 = vcmp.lt.s32.totalorder %v71, 3
    %v534 = vsel %vm533, %v531, %v532
    %v535 = vsel %vm533, %v530, %v531
    %v536 = vsel %vm533, %v529, %v530
    %v537 = vsel %vm533, %v528, %v529
    %v538 = vsel %vm533, %v527, %v528
    %v539 = vsel %vm533, %v526, %v527
    %v540 = vsel %vm533, %v525, %v526
    %v541 = vsel %vm533, %v524, %v525
    %v542 = vsel %vm533, %v523, %v524
    %v543 = vsel %vm533, %v522, %v523
    %v544 = vsel %vm533, %v521, %v522
    %v545 = vsel %vm533, %v520, %v521
    %v546 = vsel %vm533, %v519, %v520
    %v547 = vsel %vm533, %v518, %v519
    %v548 = vsel %vm533, %v517, %v518
    %v549 = vsel %vm533, %v532, %v517
    %v550 = vsel %vm501, %v549, 0.0
    %v551 = vsel %vm502, %v548, 0.0
    %v552 = vsel %vm503, %v547, 0.0
    %v553 = vsel %vm504, %v546, 0.0
    %v554 = vsel %vm505, %v545, 0.0
    %v555 = vsel %vm506, %v544, 0.0
    %v556 = vsel %vm507, %v543, 0.0
    %v557 = vsel %vm508, %v542, 0.0
    %v558 = vsel %vm509, %v541, 0.0
    %v559 = vsel %vm510, %v540, 0.0
    %v560 = vsel %vm511, %v539, 0.0
    %v561 = vsel %vm512, %v538, 0.0
    %v562 = vsel %vm513, %v537, 0.0
    %v563 = vsel %vm514, %v536, 0.0
    %v564 = vsel %vm515, %v535, 0.0
    %v565 = vsel %vm516, %v534, 0.0
    %vm566 = vcmp.le.s32.totalorder %v263, 60
    %vm567 = vcmp.le.s32.totalorder %v264, 60
    %vm568 = vcmp.le.s32.totalorder %v265, 60
    %vm569 = vcmp.le.s32.totalorder %v266, 60
    %vm570 = vcmp.le.s32.totalorder %v267, 60
    %vm571 = vcmp.le.s32.totalorder %v268, 60
    %vm572 = vcmp.le.s32.totalorder %v269, 60
    %vm573 = vcmp.le.s32.totalorder %v270, 60
    %vm574 = vcmp.le.s32.totalorder %v271, 60
    %vm575 = vcmp.le.s32.totalorder %v272, 60
    %vm576 = vcmp.le.s32.totalorder %v273, 60
    %vm577 = vcmp.le.s32.totalorder %v274, 60
    %vm578 = vcmp.le.s32.totalorder %v275, 60
    %vm579 = vcmp.le.s32.totalorder %v276, 60
    %vm580 = vcmp.le.s32.totalorder %v277, 60
    %vm581 = vcmp.le.s32.totalorder %v278, 60
    %v582 = vrot.slane %v485, 3
    %v583 = vrot.slane %v486, 3
    %v584 = vrot.slane %v487, 3
    %v585 = vrot.slane %v488, 3
    %v586 = vrot.slane %v489, 3
    %v587 = vrot.slane %v490, 3
    %v588 = vrot.slane %v491, 3
    %v589 = vrot.slane %v492, 3
    %v590 = vrot.slane %v493, 3
    %v591 = vrot.slane %v494, 3
    %v592 = vrot.slane %v495, 3
    %v593 = vrot.slane %v496, 3
    %v594 = vrot.slane %v497, 3
    %v595 = vrot.slane %v498, 3
    %v596 = vrot.slane %v499, 3
    %v597 = vrot.slane %v500, 3
    %vm598 = vcmp.lt.s32.totalorder %v71, 5
    %v599 = vsel %vm598, %v596, %v597
    %v600 = vsel %vm598, %v595, %v596
    %v601 = vsel %vm598, %v594, %v595
    %v602 = vsel %vm598, %v593, %v594
    %v603 = vsel %vm598, %v592, %v593
    %v604 = vsel %vm598, %v591, %v592
    %v605 = vsel %vm598, %v590, %v591
    %v606 = vsel %vm598, %v589, %v590
    %v607 = vsel %vm598, %v588, %v589
    %v608 = vsel %vm598, %v587, %v588
    %v609 = vsel %vm598, %v586, %v587
    %v610 = vsel %vm598, %v585, %v586
    %v611 = vsel %vm598, %v584, %v585
    %v612 = vsel %vm598, %v583, %v584
    %v613 = vsel %vm598, %v582, %v583
    %v614 = vsel %vm598, %v597, %v582
    %v615 = vsel %vm566, %v613, 0.0
    %v616 = vsel %vm567, %v612, 0.0
    %v617 = vsel %vm568, %v611, 0.0
    %v618 = vsel %vm569, %v610, 0.0
    %v619 = vsel %vm570, %v609, 0.0
    %v620 = vsel %vm571, %v608, 0.0
    %v621 = vsel %vm572, %v607, 0.0
    %v622 = vsel %vm573, %v606, 0.0
    %v623 = vsel %vm574, %v605, 0.0
    %v624 = vsel %vm575, %v604, 0.0
    %v625 = vsel %vm576, %v603, 0.0
    %v626 = vsel %vm577, %v602, 0.0
    %v627 = vsel %vm578, %v601, 0.0
    %v628 = vsel %vm579, %v600, 0.0
    %v629 = vsel %vm580, %v599, 0.0
    %v630 = vsel %vm581, %v614, 0.0
    %v631 = vlaneseq
    %v632 = vshrl.u32 %v631, 7
    %v633 = vsub.s32 3, %v632
    %v634 = vrot.slane %v68, %v633
    %v635 = vmul.f32 %v634, %v550
    %v636 = vmul.f32 %v634, %v551
    %v637 = vmul.f32 %v634, %v552
    %v638 = vmul.f32 %v634, %v553
    %v639 = vmul.f32 %v634, %v554
    %v640 = vmul.f32 %v634, %v555
    %v641 = vmul.f32 %v634, %v556
    %v642 = vmul.f32 %v634, %v557
    %v643 = vmul.f32 %v634, %v558
    %v644 = vmul.f32 %v634, %v559
    %v645 = vmul.f32 %v634, %v560
    %v646 = vmul.f32 %v634, %v561
    %v647 = vmul.f32 %v634, %v562
    %v648 = vmul.f32 %v634, %v563
    %v649 = vmul.f32 %v634, %v564
    %v650 = vmul.f32 %v634, %v565
    %v651 = vlaneseq
    %v652 = vshrl.u32 %v651, 7
    %v653 = vsub.s32 4, %v652
    %v654 = vrot.slane %v68, %v653
    %v655 = vmul.f32 %v654, %v485
    %v656 = vmul.f32 %v654, %v486
    %v657 = vmul.f32 %v654, %v487
    %v658 = vmul.f32 %v654, %v488
    %v659 = vmul.f32 %v654, %v489
    %v660 = vmul.f32 %v654, %v490
    %v661 = vmul.f32 %v654, %v491
    %v662 = vmul.f32 %v654, %v492
    %v663 = vmul.f32 %v654, %v493
    %v664 = vmul.f32 %v654, %v494
    %v665 = vmul.f32 %v654, %v495
    %v666 = vmul.f32 %v654, %v496
    %v667 = vmul.f32 %v654, %v497
    %v668 = vmul.f32 %v654, %v498
    %v669 = vmul.f32 %v654, %v499
    %v670 = vmul.f32 %v654, %v500
    %v671 = vadd.f32 %v635, %v655
    %v672 = vadd.f32 %v636, %v656
    %v673 = vadd.f32 %v637, %v657
    %v674 = vadd.f32 %v638, %v658
    %v675 = vadd.f32 %v639, %v659
    %v676 = vadd.f32 %v640, %v660
    %v677 = vadd.f32 %v641, %v661
    %v678 = vadd.f32 %v642, %v662
    %v679 = vadd.f32 %v643, %v663
    %v680 = vadd.f32 %v644, %v664
    %v681 = vadd.f32 %v645, %v665
    %v682 = vadd.f32 %v646, %v666
    %v683 = vadd.f32 %v647, %v667
    %v684 = vadd.f32 %v648, %v668
    %v685 = vadd.f32 %v649, %v669
    %v686 = vadd.f32 %v650, %v670
    %v687 = vlaneseq
    %v688 = vshrl.u32 %v687, 7
    %v689 = vsub.s32 5, %v688
    %v690 = vrot.slane %v68, %v689
    %v691 = vmul.f32 %v690, %v615
    %v692 = vmul.f32 %v690, %v616
    %v693 = vmul.f32 %v690, %v617
    %v694 = vmul.f32 %v690, %v618
    %v695 = vmul.f32 %v690, %v619
    %v696 = vmul.f32 %v690, %v620
    %v697 = vmul.f32 %v690, %v621
    %v698 = vmul.f32 %v690, %v622
    %v699 = vmul.f32 %v690, %v623
    %v700 = vmul.f32 %v690, %v624
    %v701 = vmul.f32 %v690, %v625
    %v702 = vmul.f32 %v690, %v626
    %v703 = vmul.f32 %v690, %v627
    %v704 = vmul.f32 %v690, %v628
    %v705 = vmul.f32 %v690, %v629
    %v706 = vmul.f32 %v690, %v630
    %v707 = vadd.f32 %v671, %v691
    %v708 = vadd.f32 %v672, %v692
    %v709 = vadd.f32 %v673, %v693
    %v710 = vadd.f32 %v674, %v694
    %v711 = vadd.f32 %v675, %v695
    %v712 = vadd.f32 %v676, %v696
    %v713 = vadd.f32 %v677, %v697
    %v714 = vadd.f32 %v678, %v698
    %v715 = vadd.f32 %v679, %v699
    %v716 = vadd.f32 %v680, %v700
    %v717 = vadd.f32 %v681, %v701
    %v718 = vadd.f32 %v682, %v702
    %v719 = vadd.f32 %v683, %v703
    %v720 = vadd.f32 %v684, %v704
    %v721 = vadd.f32 %v685, %v705
    %v722 = vadd.f32 %v686, %v706
    %vm723 = vcmask 523264
    %v724 = vsel %vm723, %v707, 0.0
    %725 = vadd.xlane.f32.xlu0 %v724
    %v726 = vpop.xlane.xlu0 %725
    %v727 = vsel %vm723, %v708, 0.0
    %728 = vadd.xlane.f32.xlu0 %v727
    %v729 = vpop.xlane.xlu0 %728
    %v730 = vsel %vm723, %v709, 0.0
    %731 = vadd.xlane.f32.xlu0 %v730
    %v732 = vpop.xlane.xlu0 %731
    %v733 = vsel %vm723, %v710, 0.0
    %734 = vadd.xlane.f32.xlu0 %v733
    %v735 = vpop.xlane.xlu0 %734
    %v736 = vsel %vm723, %v711, 0.0
    %737 = vadd.xlane.f32.xlu0 %v736
    %v738 = vpop.xlane.xlu0 %737
    %v739 = vsel %vm723, %v712, 0.0
    %740 = vadd.xlane.f32.xlu0 %v739
    %v741 = vpop.xlane.xlu0 %740
    %v742 = vsel %vm723, %v713, 0.0
    %743 = vadd.xlane.f32.xlu0 %v742
    %v744 = vpop.xlane.xlu0 %743
    %v745 = vsel %vm723, %v714, 0.0
    %746 = vadd.xlane.f32.xlu0 %v745
    %v747 = vpop.xlane.xlu0 %746
    %v748 = vsel %vm723, %v715, 0.0
    %749 = vadd.xlane.f32.xlu0 %v748
    %v750 = vpop.xlane.xlu0 %749
    %v751 = vsel %vm723, %v716, 0.0
    %752 = vadd.xlane.f32.xlu0 %v751
    %v753 = vpop.xlane.xlu0 %752
    %v754 = vsel %vm723, %v717, 0.0
    %755 = vadd.xlane.f32.xlu0 %v754
    %v756 = vpop.xlane.xlu0 %755
    %v757 = vsel %vm723, %v718, 0.0
    %758 = vadd.xlane.f32.xlu0 %v757
    %v759 = vpop.xlane.xlu0 %758
    %v760 = vsel %vm723, %v719, 0.0
    %761 = vadd.xlane.f32.xlu0 %v760
    %v762 = vpop.xlane.xlu0 %761
    %v763 = vsel %vm723, %v720, 0.0
    %764 = vadd.xlane.f32.xlu0 %v763
    %v765 = vpop.xlane.xlu0 %764
    %v766 = vsel %vm723, %v721, 0.0
    %767 = vadd.xlane.f32.xlu0 %v766
    %v768 = vpop.xlane.xlu0 %767
    %v769 = vsel %vm723, %v722, 0.0
    %770 = vadd.xlane.f32.xlu0 %v769
    %v771 = vpop.xlane.xlu0 %770
    %v772 = vmul.f32 %v726, 0.015625
    %v773 = vmul.f32 %v729, 0.015625
    %v774 = vmul.f32 %v732, 0.015625
    %v775 = vmul.f32 %v735, 0.015625
    %v776 = vmul.f32 %v738, 0.015625
    %v777 = vmul.f32 %v741, 0.015625
    %v778 = vmul.f32 %v744, 0.015625
    %v779 = vmul.f32 %v747, 0.015625
    %v780 = vmul.f32 %v750, 0.015625
    %v781 = vmul.f32 %v753, 0.015625
    %v782 = vmul.f32 %v756, 0.015625
    %v783 = vmul.f32 %v759, 0.015625
    %v784 = vmul.f32 %v762, 0.015625
    %v785 = vmul.f32 %v765, 0.015625
    %v786 = vmul.f32 %v768, 0.015625
    %v787 = vmul.f32 %v771, 0.015625
    %v788 = vmul.f32 %v707, %v707
    %v789 = vmul.f32 %v708, %v708
    %v790 = vmul.f32 %v709, %v709
    %v791 = vmul.f32 %v710, %v710
    %v792 = vmul.f32 %v711, %v711
    %v793 = vmul.f32 %v712, %v712
    %v794 = vmul.f32 %v713, %v713
    %v795 = vmul.f32 %v714, %v714
    %v796 = vmul.f32 %v715, %v715
    %v797 = vmul.f32 %v716, %v716
    %v798 = vmul.f32 %v717, %v717
    %v799 = vmul.f32 %v718, %v718
    %v800 = vmul.f32 %v719, %v719
    %v801 = vmul.f32 %v720, %v720
    %v802 = vmul.f32 %v721, %v721
    %v803 = vmul.f32 %v722, %v722
    %v804 = vsel %vm723, %v788, 0.0
    %805 = vadd.xlane.f32.xlu0 %v804
    %v806 = vpop.xlane.xlu0 %805
    %v807 = vsel %vm723, %v789, 0.0
    %808 = vadd.xlane.f32.xlu0 %v807
    %v809 = vpop.xlane.xlu0 %808
    %v810 = vsel %vm723, %v790, 0.0
    %811 = vadd.xlane.f32.xlu0 %v810
    %v812 = vpop.xlane.xlu0 %811
    %v813 = vsel %vm723, %v791, 0.0
    %814 = vadd.xlane.f32.xlu0 %v813
    %v815 = vpop.xlane.xlu0 %814
    %v816 = vsel %vm723, %v792, 0.0
    %817 = vadd.xlane.f32.xlu0 %v816
    %v818 = vpop.xlane.xlu0 %817
    %v819 = vsel %vm723, %v793, 0.0
    %820 = vadd.xlane.f32.xlu0 %v819
    %v821 = vpop.xlane.xlu0 %820
    %v822 = vsel %vm723, %v794, 0.0
    %823 = vadd.xlane.f32.xlu0 %v822
    %v824 = vpop.xlane.xlu0 %823
    %v825 = vsel %vm723, %v795, 0.0
    %826 = vadd.xlane.f32.xlu0 %v825
    %v827 = vpop.xlane.xlu0 %826
    %v828 = vsel %vm723, %v796, 0.0
    %829 = vadd.xlane.f32.xlu0 %v828
    %v830 = vpop.xlane.xlu0 %829
    %v831 = vsel %vm723, %v797, 0.0
    %832 = vadd.xlane.f32.xlu0 %v831
    %v833 = vpop.xlane.xlu0 %832
    %v834 = vsel %vm723, %v798, 0.0
    %835 = vadd.xlane.f32.xlu0 %v834
    %v836 = vpop.xlane.xlu0 %835
    %v837 = vsel %vm723, %v799, 0.0
    %838 = vadd.xlane.f32.xlu0 %v837
    %v839 = vpop.xlane.xlu0 %838
    %v840 = vsel %vm723, %v800, 0.0
    %841 = vadd.xlane.f32.xlu0 %v840
    %v842 = vpop.xlane.xlu0 %841
    %v843 = vsel %vm723, %v801, 0.0
    %844 = vadd.xlane.f32.xlu0 %v843
    %v845 = vpop.xlane.xlu0 %844
    %v846 = vsel %vm723, %v802, 0.0
    %847 = vadd.xlane.f32.xlu0 %v846
    %v848 = vpop.xlane.xlu0 %847
    %v849 = vsel %vm723, %v803, 0.0
    %850 = vadd.xlane.f32.xlu0 %v849
    %v851 = vpop.xlane.xlu0 %850
    %v852 = vmul.f32 %v806, 0.015625
    %v853 = vmul.f32 %v809, 0.015625
    %v854 = vmul.f32 %v812, 0.015625
    %v855 = vmul.f32 %v815, 0.015625
    %v856 = vmul.f32 %v818, 0.015625
    %v857 = vmul.f32 %v821, 0.015625
    %v858 = vmul.f32 %v824, 0.015625
    %v859 = vmul.f32 %v827, 0.015625
    %v860 = vmul.f32 %v830, 0.015625
    %v861 = vmul.f32 %v833, 0.015625
    %v862 = vmul.f32 %v836, 0.015625
    %v863 = vmul.f32 %v839, 0.015625
    %v864 = vmul.f32 %v842, 0.015625
    %v865 = vmul.f32 %v845, 0.015625
    %v866 = vmul.f32 %v848, 0.015625
    %v867 = vmul.f32 %v851, 0.015625
    %v868 = vmul.f32 %v772, %v772
    %v869 = vmul.f32 %v773, %v773
    %v870 = vmul.f32 %v774, %v774
    %v871 = vmul.f32 %v775, %v775
    %v872 = vmul.f32 %v776, %v776
    %v873 = vmul.f32 %v777, %v777
    %v874 = vmul.f32 %v778, %v778
    %v875 = vmul.f32 %v779, %v779
    %v876 = vmul.f32 %v780, %v780
    %v877 = vmul.f32 %v781, %v781
    %v878 = vmul.f32 %v782, %v782
    %v879 = vmul.f32 %v783, %v783
    %v880 = vmul.f32 %v784, %v784
    %v881 = vmul.f32 %v785, %v785
    %v882 = vmul.f32 %v786, %v786
    %v883 = vmul.f32 %v787, %v787
    %v884 = vsub.f32 %v852, %v868
    %v885 = vsub.f32 %v853, %v869
    %v886 = vsub.f32 %v854, %v870
    %v887 = vsub.f32 %v855, %v871
    %v888 = vsub.f32 %v856, %v872
    %v889 = vsub.f32 %v857, %v873
    %v890 = vsub.f32 %v858, %v874
    %v891 = vsub.f32 %v859, %v875
    %v892 = vsub.f32 %v860, %v876
    %v893 = vsub.f32 %v861, %v877
    %v894 = vsub.f32 %v862, %v878
    %v895 = vsub.f32 %v863, %v879
    %v896 = vsub.f32 %v864, %v880
    %v897 = vsub.f32 %v865, %v881
    %v898 = vsub.f32 %v866, %v882
    %v899 = vsub.f32 %v867, %v883
    %v900 = vsub.f32 %v707, %v772
    %v901 = vsub.f32 %v708, %v773
    %v902 = vsub.f32 %v709, %v774
    %v903 = vsub.f32 %v710, %v775
    %v904 = vsub.f32 %v711, %v776
    %v905 = vsub.f32 %v712, %v777
    %v906 = vsub.f32 %v713, %v778
    %v907 = vsub.f32 %v714, %v779
    %v908 = vsub.f32 %v715, %v780
    %v909 = vsub.f32 %v716, %v781
    %v910 = vsub.f32 %v717, %v782
    %v911 = vsub.f32 %v718, %v783
    %v912 = vsub.f32 %v719, %v784
    %v913 = vsub.f32 %v720, %v785
    %v914 = vsub.f32 %v721, %v786
    %v915 = vsub.f32 %v722, %v787
    %v916 = vadd.f32 %v884, 1e-06
    %v917 = vadd.f32 %v885, 1e-06
    %v918 = vadd.f32 %v886, 1e-06
    %v919 = vadd.f32 %v887, 1e-06
    %v920 = vadd.f32 %v888, 1e-06
    %v921 = vadd.f32 %v889, 1e-06
    %v922 = vadd.f32 %v890, 1e-06
    %v923 = vadd.f32 %v891, 1e-06
    %v924 = vadd.f32 %v892, 1e-06
    %v925 = vadd.f32 %v893, 1e-06
    %v926 = vadd.f32 %v894, 1e-06
    %v927 = vadd.f32 %v895, 1e-06
    %v928 = vadd.f32 %v896, 1e-06
    %v929 = vadd.f32 %v897, 1e-06
    %v930 = vadd.f32 %v898, 1e-06
    %v931 = vadd.f32 %v899, 1e-06
    %v932 = vrsqrt.pop %v916
    %v933 = vrsqrt.pop %v917
    %v934 = vrsqrt.pop %v918
    %v935 = vrsqrt.pop %v919
    %v936 = vrsqrt.pop %v920
    %v937 = vrsqrt.pop %v921
    %v938 = vrsqrt.pop %v922
    %v939 = vrsqrt.pop %v923
    %v940 = vrsqrt.pop %v924
    %v941 = vrsqrt.pop %v925
    %v942 = vrsqrt.pop %v926
    %v943 = vrsqrt.pop %v927
    %v944 = vrsqrt.pop %v928
    %v945 = vrsqrt.pop %v929
    %v946 = vrsqrt.pop %v930
    %v947 = vrsqrt.pop %v931
    %v948 = vmul.f32 %v900, %v932
    %v949 = vmul.f32 %v901, %v933
    %v950 = vmul.f32 %v902, %v934
    %v951 = vmul.f32 %v903, %v935
    %v952 = vmul.f32 %v904, %v936
    %v953 = vmul.f32 %v905, %v937
    %v954 = vmul.f32 %v906, %v938
    %v955 = vmul.f32 %v907, %v939
    %v956 = vmul.f32 %v908, %v940
    %v957 = vmul.f32 %v909, %v941
    %v958 = vmul.f32 %v910, %v942
    %v959 = vmul.f32 %v911, %v943
    %v960 = vmul.f32 %v912, %v944
    %v961 = vmul.f32 %v913, %v945
    %v962 = vmul.f32 %v914, %v946
    %v963 = vmul.f32 %v915, %v947
    %v964 = vlaneseq
    %v965 = vshrl.u32 %v964, 7
    %v966 = vsub.s32 6, %v965
    %v967 = vrot.slane %v68, %v966
    %v968 = vmul.f32 %v948, %v967
    %v969 = vmul.f32 %v949, %v967
    %v970 = vmul.f32 %v950, %v967
    %v971 = vmul.f32 %v951, %v967
    %v972 = vmul.f32 %v952, %v967
    %v973 = vmul.f32 %v953, %v967
    %v974 = vmul.f32 %v954, %v967
    %v975 = vmul.f32 %v955, %v967
    %v976 = vmul.f32 %v956, %v967
    %v977 = vmul.f32 %v957, %v967
    %v978 = vmul.f32 %v958, %v967
    %v979 = vmul.f32 %v959, %v967
    %v980 = vmul.f32 %v960, %v967
    %v981 = vmul.f32 %v961, %v967
    %v982 = vmul.f32 %v962, %v967
    %v983 = vmul.f32 %v963, %v967
    %v984 = vlaneseq
    %v985 = vshrl.u32 %v984, 7
    %v986 = vsub.s32 7, %v985
    %v987 = vrot.slane %v68, %v986
    %v988 = vadd.f32 %v968, %v987
    %v989 = vadd.f32 %v969, %v987
    %v990 = vadd.f32 %v970, %v987
    %v991 = vadd.f32 %v971, %v987
    %v992 = vadd.f32 %v972, %v987
    %v993 = vadd.f32 %v973, %v987
    %v994 = vadd.f32 %v974, %v987
    %v995 = vadd.f32 %v975, %v987
    %v996 = vadd.f32 %v976, %v987
    %v997 = vadd.f32 %v977, %v987
    %v998 = vadd.f32 %v978, %v987
    %v999 = vadd.f32 %v979, %v987
    %v1000 = vadd.f32 %v980, %v987
    %v1001 = vadd.f32 %v981, %v987
    %v1002 = vadd.f32 %v982, %v987
    %v1003 = vadd.f32 %v983, %v987
    %v1004 = vld [vmem:[%s2] sm:$0xff]
    %v1005 = vld [vmem:[%s2 + $0x8] sm:$0xff]
    %v1006 = vld [vmem:[%s2 + $0x10] sm:$0xff]
    %v1007 = vld [vmem:[%s2 + $0x18] sm:$0xff]
    %v1008 = vld [vmem:[%s2 + $0x20] sm:$0xff]
    %v1009 = vld [vmem:[%s2 + $0x28] sm:$0xff]
    %v1010 = vld [vmem:[%s2 + $0x30] sm:$0xff]
    %v1011 = vld [vmem:[%s2 + $0x38] sm:$0xff]
    %v1012 = vlaneseq
    %v1013 = vshrl.u32 %v1012, 7
    %v1014 = vsub.s32 0, %v1013
    %v1015 = vrot.slane %v69, %v1014
    %v1017 = vsel %vm723, %v988, 0
    %v1020 = vsel %vm723, %v989, 0
    %v1023 = vsel %vm723, %v990, 0
    %v1026 = vsel %vm723, %v991, 0
    %v1029 = vsel %vm723, %v992, 0
    %v1032 = vsel %vm723, %v993, 0
    %v1035 = vsel %vm723, %v994, 0
    %v1038 = vsel %vm723, %v995, 0
    %v1041 = vsel %vm723, %v996, 0
    %v1044 = vsel %vm723, %v997, 0
    %v1047 = vsel %vm723, %v998, 0
    %v1050 = vsel %vm723, %v999, 0
    %v1053 = vsel %vm723, %v1000, 0
    %v1056 = vsel %vm723, %v1001, 0
    %v1059 = vsel %vm723, %v1002, 0
    %v1062 = vsel %vm723, %v1003, 0
    %1064 = vmatprep.subr.mxu0 0.0
    %1065 = vmatpush1.msra.mxu0 0.0
    %1066 = vmatprep.subr.mxu0 0.0
    %1067 = vmatpush1.msra.mxu0 0.0
    %1068 = vmatprep.subr.mxu0 0.0
    %1069 = vmatpush1.msra.mxu0 0.0
    %1070 = vmatprep.subr.mxu0 0.0
    %1071 = vmatpush1.msra.mxu0 0.0
    %1072 = vmatprep.subr.mxu0 0.0
    %1073 = vmatpush1.msra.mxu0 0.0
    %1074 = vmatprep.subr.mxu0 0.0
    %1075 = vmatpush1.msra.mxu0 0.0
    %1076 = vmatprep.subr.mxu0 0.0
    %1077 = vmatpush1.msra.mxu0 0.0
    %1078 = vmatprep.subr.mxu0 0.0
    %1079 = vmatpush1.msra.mxu0 0.0
    %1080 = vmatprep.subr.mxu0 0.0
    %1081 = vmatpush1.msra.mxu0 %v1011
    %1082 = vmatprep.subr.mxu0 0.0
    %1083 = vmatpush1.msra.mxu0 %v1010
    %1084 = vmatprep.subr.mxu0 0.0
    %1085 = vmatpush1.msra.mxu0 %v1009
    %1086 = vmatprep.subr.mxu0 0.0
    %1087 = vmatpush1.msra.mxu0 %v1008
    %1088 = vmatprep.subr.mxu0 0.0
    %1089 = vmatpush1.msra.mxu0 %v1007
    %1090 = vmatprep.subr.mxu0 0.0
    %1091 = vmatpush1.msra.mxu0 %v1006
    %1092 = vmatprep.subr.mxu0 0.0
    %1093 = vmatpush1.msra.mxu0 %v1005
    %1094 = vmatprep.subr.mxu0 0.0
    %1095 = vmatpush1.msra.mxu0 %v1004
    %1096 = vmatprep.subr.mxu0 0.0
    %1097 = vmatpush2.msra.mxu0 0.0
    %1098 = vmatprep.subr.mxu0 0.0
    %1099 = vmatpush2.msra.mxu0 0.0
    %1100 = vmatprep.subr.mxu0 0.0
    %1101 = vmatpush2.msra.mxu0 0.0
    %1102 = vmatprep.subr.mxu0 0.0
    %1103 = vmatpush2.msra.mxu0 0.0
    %1104 = vmatprep.subr.mxu0 0.0
    %1105 = vmatpush2.msra.mxu0 0.0
    %1106 = vmatprep.subr.mxu0 0.0
    %1107 = vmatpush2.msra.mxu0 0.0
    %1108 = vmatprep.subr.mxu0 0.0
    %1109 = vmatpush2.msra.mxu0 0.0
    %1110 = vmatprep.subr.mxu0 0.0
    %1111 = vmatpush2.msra.mxu0 0.0
    %1112 = vmatprep.subr.mxu0 0.0
    %1113 = vmatpush2.msra.mxu0 0.0
    %1114 = vmatprep.subr.mxu0 0.0
    %1115 = vmatpush2.msra.mxu0 0.0
    %1116 = vmatprep.subr.mxu0 0.0
    %1117 = vmatpush2.msra.mxu0 0.0
    %1118 = vmatprep.subr.mxu0 0.0
    %1119 = vmatpush2.msra.mxu0 0.0
    %1120 = vmatprep.subr.mxu0 0.0
    %1121 = vmatpush2.msra.mxu0 0.0
    %1122 = vmatprep.subr.mxu0 0.0
    %1123 = vmatpush2.msra.mxu0 0.0
    %1124 = vmatprep.subr.mxu0 0.0
    %1125 = vmatpush2.msra.mxu0 0.0
    %1126 = vmatprep.subr.mxu0 0.0
    %1127 = vmatpush2.msra.mxu0 0.0
    %1128 = vmatprep.mubr.f32.mxu0 0.0
    %1129 = vmatmul.mubr.f32.gmra.mxu0 %v1017
    %v1130 = vpop.f32.mrf.mxu0
    %v1131 = vadd.f32 %v1015, %v1130
    %v1132 = vpop.f32.mrf.mxu0
    %1133 = vmatprep.mubr.f32.mxu0 0.0
    %1134 = vmatmul.mubr.f32.gmra.mxu0 %v1020
    %v1135 = vpop.f32.mrf.mxu0
    %v1136 = vadd.f32 %v1015, %v1135
    %v1137 = vpop.f32.mrf.mxu0
    %1138 = vmatprep.mubr.f32.mxu0 0.0
    %1139 = vmatmul.mubr.f32.gmra.mxu0 %v1023
    %v1140 = vpop.f32.mrf.mxu0
    %v1141 = vadd.f32 %v1015, %v1140
    %v1142 = vpop.f32.mrf.mxu0
    %1143 = vmatprep.mubr.f32.mxu0 0.0
    %1144 = vmatmul.mubr.f32.gmra.mxu0 %v1026
    %v1145 = vpop.f32.mrf.mxu0
    %v1146 = vadd.f32 %v1015, %v1145
    %v1147 = vpop.f32.mrf.mxu0
    %1148 = vmatprep.mubr.f32.mxu0 0.0
    %1149 = vmatmul.mubr.f32.gmra.mxu0 %v1029
    %v1150 = vpop.f32.mrf.mxu0
    %v1151 = vadd.f32 %v1015, %v1150
    %v1152 = vpop.f32.mrf.mxu0
    %1153 = vmatprep.mubr.f32.mxu0 0.0
    %1154 = vmatmul.mubr.f32.gmra.mxu0 %v1032
    %v1155 = vpop.f32.mrf.mxu0
    %v1156 = vadd.f32 %v1015, %v1155
    %v1157 = vpop.f32.mrf.mxu0
    %1158 = vmatprep.mubr.f32.mxu0 0.0
    %1159 = vmatmul.mubr.f32.gmra.mxu0 %v1035
    %v1160 = vpop.f32.mrf.mxu0
    %v1161 = vadd.f32 %v1015, %v1160
    %v1162 = vpop.f32.mrf.mxu0
    %1163 = vmatprep.mubr.f32.mxu0 0.0
    %1164 = vmatmul.mubr.f32.gmra.mxu0 %v1038
    %v1165 = vpop.f32.mrf.mxu0
    %v1166 = vadd.f32 %v1015, %v1165
    %v1167 = vpop.f32.mrf.mxu0
    %1168 = vmatprep.mubr.f32.mxu0 0.0
    %1169 = vmatmul.mubr.f32.gmra.mxu0 %v1041
    %v1170 = vpop.f32.mrf.mxu0
    %v1171 = vadd.f32 %v1015, %v1170
    %v1172 = vpop.f32.mrf.mxu0
    %1173 = vmatprep.mubr.f32.mxu0 0.0
    %1174 = vmatmul.mubr.f32.gmra.mxu0 %v1044
    %v1175 = vpop.f32.mrf.mxu0
    %v1176 = vadd.f32 %v1015, %v1175
    %v1177 = vpop.f32.mrf.mxu0
    %1178 = vmatprep.mubr.f32.mxu0 0.0
    %1179 = vmatmul.mubr.f32.gmra.mxu0 %v1047
    %v1180 = vpop.f32.mrf.mxu0
    %v1181 = vadd.f32 %v1015, %v1180
    %v1182 = vpop.f32.mrf.mxu0
    %1183 = vmatprep.mubr.f32.mxu0 0.0
    %1184 = vmatmul.mubr.f32.gmra.mxu0 %v1050
    %v1185 = vpop.f32.mrf.mxu0
    %v1186 = vadd.f32 %v1015, %v1185
    %v1187 = vpop.f32.mrf.mxu0
    %1188 = vmatprep.mubr.f32.mxu0 0.0
    %1189 = vmatmul.mubr.f32.gmra.mxu0 %v1053
    %v1190 = vpop.f32.mrf.mxu0
    %v1191 = vadd.f32 %v1015, %v1190
    %v1192 = vpop.f32.mrf.mxu0
    %1193 = vmatprep.mubr.f32.mxu0 0.0
    %1194 = vmatmul.mubr.f32.gmra.mxu0 %v1056
    %v1195 = vpop.f32.mrf.mxu0
    %v1196 = vadd.f32 %v1015, %v1195
    %v1197 = vpop.f32.mrf.mxu0
    %1198 = vmatprep.mubr.f32.mxu0 0.0
    %1199 = vmatmul.mubr.f32.gmra.mxu0 %v1059
    %v1200 = vpop.f32.mrf.mxu0
    %v1201 = vadd.f32 %v1015, %v1200
    %v1202 = vpop.f32.mrf.mxu0
    %1203 = vmatprep.mubr.f32.mxu0 0.0
    %1204 = vmatmul.mubr.f32.gmra.mxu0 %v1062
    %v1205 = vpop.f32.mrf.mxu0
    %v1206 = vadd.f32 %v1015, %v1205
    %v1207 = vpop.f32.mrf.mxu0
    %1208 = vdwg.mxu0
    %v1209 = vadd.f32 %v1131, %v52
    %v1210 = vadd.f32 %v1136, %v53
    %v1211 = vadd.f32 %v1141, %v54
    %v1212 = vadd.f32 %v1146, %v55
    %v1213 = vadd.f32 %v1151, %v56
    %v1214 = vadd.f32 %v1156, %v57
    %v1215 = vadd.f32 %v1161, %v58
    %v1216 = vadd.f32 %v1166, %v59
    %v1217 = vadd.f32 %v1171, %v60
    %v1218 = vadd.f32 %v1176, %v61
    %v1219 = vadd.f32 %v1181, %v62
    %v1220 = vadd.f32 %v1186, %v63
    %v1221 = vadd.f32 %v1191, %v64
    %v1222 = vadd.f32 %v1196, %v65
    %v1223 = vadd.f32 %v1201, %v66
    %v1224 = vadd.f32 %v1206, %v67
    %v1225 = vld [vmem:[#allocation5] sm:$0xff]
    %v1226 = vld [vmem:[#allocation5 + $0x8] sm:$0xff]
    %v1227 = vld [vmem:[#allocation5 + $0x10] sm:$0xff]
    %v1228 = vld [vmem:[#allocation5 + $0x18] sm:$0xff]
    %v1229 = vld [vmem:[#allocation5 + $0x20] sm:$0xff]
    %v1230 = vld [vmem:[#allocation5 + $0x28] sm:$0xff]
    %v1231 = vld [vmem:[#allocation5 + $0x30] sm:$0xff]
    %v1232 = vld [vmem:[#allocation5 + $0x38] sm:$0xff]
    %v1233 = vld [vmem:[#allocation5 + $0x40] sm:$0xff]
    %v1234 = vld [vmem:[#allocation5 + $0x48] sm:$0xff]
    %v1235 = vld [vmem:[#allocation5 + $0x50] sm:$0xff]
    %v1236 = vld [vmem:[#allocation5 + $0x58] sm:$0xff]
    %v1237 = vld [vmem:[#allocation5 + $0x60] sm:$0xff]
    %v1238 = vld [vmem:[#allocation5 + $0x68] sm:$0xff]
    %v1239 = vld [vmem:[#allocation5 + $0x70] sm:$0xff]
    %v1240 = vld [vmem:[#allocation5 + $0x78] sm:$0xff]
    %v1241 = vld [vmem:[#allocation5 + $0x80] sm:$0xff]
    %v1242 = vld [vmem:[#allocation5 + $0x88] sm:$0xff]
    %v1243 = vld [vmem:[#allocation5 + $0x90] sm:$0xff]
    %v1244 = vld [vmem:[#allocation5 + $0x98] sm:$0xff]
    %v1245 = vld [vmem:[#allocation5 + $0xa0] sm:$0xff]
    %v1246 = vld [vmem:[#allocation5 + $0xa8] sm:$0xff]
    %v1247 = vld [vmem:[#allocation5 + $0xb0] sm:$0xff]
    %v1248 = vld [vmem:[#allocation5 + $0xb8] sm:$0xff]
    %v1249 = vld [vmem:[#allocation5 + $0xc0] sm:$0xff]
    %v1250 = vld [vmem:[#allocation5 + $0xc8] sm:$0xff]
    %v1251 = vld [vmem:[#allocation5 + $0xd0] sm:$0xff]
    %v1252 = vld [vmem:[#allocation5 + $0xd8] sm:$0xff]
    %v1253 = vld [vmem:[#allocation5 + $0xe0] sm:$0xff]
    %v1254 = vld [vmem:[#allocation5 + $0xe8] sm:$0xff]
    %v1255 = vld [vmem:[#allocation5 + $0xf0] sm:$0xff]
    %v1256 = vld [vmem:[#allocation5 + $0xf8] sm:$0xff]
    %v1257 = vld [vmem:[#allocation5 + $0x100] sm:$0xff]
    %v1258 = vld [vmem:[#allocation5 + $0x108] sm:$0xff]
    %v1259 = vld [vmem:[#allocation5 + $0x110] sm:$0xff]
    %v1260 = vld [vmem:[#allocation5 + $0x118] sm:$0xff]
    %v1261 = vld [vmem:[#allocation5 + $0x120] sm:$0xff]
    %v1262 = vld [vmem:[#allocation5 + $0x128] sm:$0xff]
    %v1263 = vld [vmem:[#allocation5 + $0x130] sm:$0xff]
    %v1264 = vld [vmem:[#allocation5 + $0x138] sm:$0xff]
    %1265 = vmatprep.subr.mxu0 0.0
    %1266 = vmatpush1.msra.mxu0 %v1224
    %1267 = vmatprep.subr.mxu0 0.0
    %1268 = vmatpush1.msra.mxu0 %v1223
    %1269 = vmatprep.subr.mxu0 0.0
    %1270 = vmatpush1.msra.mxu0 %v1222
    %1271 = vmatprep.subr.mxu0 0.0
    %1272 = vmatpush1.msra.mxu0 %v1221
    %1273 = vmatprep.subr.mxu0 0.0
    %1274 = vmatpush1.msra.mxu0 %v1220
    %1275 = vmatprep.subr.mxu0 0.0
    %1276 = vmatpush1.msra.mxu0 %v1219
    %1277 = vmatprep.subr.mxu0 0.0
    %1278 = vmatpush1.msra.mxu0 %v1218
    %1279 = vmatprep.subr.mxu0 0.0
    %1280 = vmatpush1.msra.mxu0 %v1217
    %1281 = vmatprep.subr.mxu0 0.0
    %1282 = vmatpush1.msra.mxu0 %v1216
    %1283 = vmatprep.subr.mxu0 0.0
    %1284 = vmatpush1.msra.mxu0 %v1215
    %1285 = vmatprep.subr.mxu0 0.0
    %1286 = vmatpush1.msra.mxu0 %v1214
    %1287 = vmatprep.subr.mxu0 0.0
    %1288 = vmatpush1.msra.mxu0 %v1213
    %1289 = vmatprep.subr.mxu0 0.0
    %1290 = vmatpush1.msra.mxu0 %v1212
    %1291 = vmatprep.subr.mxu0 0.0
    %1292 = vmatpush1.msra.mxu0 %v1211
    %1293 = vmatprep.subr.mxu0 0.0
    %1294 = vmatpush1.msra.mxu0 %v1210
    %1295 = vmatprep.subr.mxu0 0.0
    %1296 = vmatpush1.msra.mxu0 %v1209
    %1297 = vmatprep.subr.mxu0 0.0
    %1298 = vmatpush2.msra.mxu0 0.0
    %1299 = vmatprep.subr.mxu0 0.0
    %1300 = vmatpush2.msra.mxu0 0.0
    %1301 = vmatprep.subr.mxu0 0.0
    %1302 = vmatpush2.msra.mxu0 0.0
    %1303 = vmatprep.subr.mxu0 0.0
    %1304 = vmatpush2.msra.mxu0 0.0
    %1305 = vmatprep.subr.mxu0 0.0
    %1306 = vmatpush2.msra.mxu0 0.0
    %1307 = vmatprep.subr.mxu0 0.0
    %1308 = vmatpush2.msra.mxu0 0.0
    %1309 = vmatprep.subr.mxu0 0.0
    %1310 = vmatpush2.msra.mxu0 0.0
    %1311 = vmatprep.subr.mxu0 0.0
    %1312 = vmatpush2.msra.mxu0 0.0
    %1313 = vmatprep.subr.mxu0 0.0
    %1314 = vmatpush2.msra.mxu0 0.0
    %1315 = vmatprep.subr.mxu0 0.0
    %1316 = vmatpush2.msra.mxu0 0.0
    %1317 = vmatprep.subr.mxu0 0.0
    %1318 = vmatpush2.msra.mxu0 0.0
    %1319 = vmatprep.subr.mxu0 0.0
    %1320 = vmatpush2.msra.mxu0 0.0
    %1321 = vmatprep.subr.mxu0 0.0
    %1322 = vmatpush2.msra.mxu0 0.0
    %1323 = vmatprep.subr.mxu0 0.0
    %1324 = vmatpush2.msra.mxu0 0.0
    %1325 = vmatprep.subr.mxu0 0.0
    %1326 = vmatpush2.msra.mxu0 0.0
    %1327 = vmatprep.subr.mxu0 0.0
    %1328 = vmatpush2.msra.mxu0 0.0
    %1329 = vmatprep.mubr.f32.mxu0 0.0
    %1330 = vmatmul.mubr.f32.gmra.mxu0 %v1225
    %v1331 = vpop.f32.mrf.mxu0
    %v1332 = vadd.f32 0.0, %v1331
    %v1333 = vpop.f32.mrf.mxu0
    %1334 = vmatprep.mubr.f32.mxu0 0.0
    %1335 = vmatmul.mubr.f32.gmra.mxu0 %v1226
    %v1336 = vpop.f32.mrf.mxu0
    %v1337 = vadd.f32 0.0, %v1336
    %v1338 = vpop.f32.mrf.mxu0
    %1339 = vmatprep.mubr.f32.mxu0 0.0
    %1340 = vmatmul.mubr.f32.gmra.mxu0 %v1227
    %v1341 = vpop.f32.mrf.mxu0
    %v1342 = vadd.f32 0.0, %v1341
    %v1343 = vpop.f32.mrf.mxu0
    %1344 = vmatprep.mubr.f32.mxu0 0.0
    %1345 = vmatmul.mubr.f32.gmra.mxu0 %v1228
    %v1346 = vpop.f32.mrf.mxu0
    %v1347 = vadd.f32 0.0, %v1346
    %v1348 = vpop.f32.mrf.mxu0
    %1349 = vmatprep.mubr.f32.mxu0 0.0
    %1350 = vmatmul.mubr.f32.gmra.mxu0 %v1229
    %v1351 = vpop.f32.mrf.mxu0
    %v1352 = vadd.f32 0.0, %v1351
    %v1353 = vpop.f32.mrf.mxu0
    %1354 = vmatprep.mubr.f32.mxu0 0.0
    %1355 = vmatmul.mubr.f32.gmra.mxu0 %v1230
    %v1356 = vpop.f32.mrf.mxu0
    %v1357 = vadd.f32 0.0, %v1356
    %v1358 = vpop.f32.mrf.mxu0
    %1359 = vmatprep.mubr.f32.mxu0 0.0
    %1360 = vmatmul.mubr.f32.gmra.mxu0 %v1231
    %v1361 = vpop.f32.mrf.mxu0
    %v1362 = vadd.f32 0.0, %v1361
    %v1363 = vpop.f32.mrf.mxu0
    %1364 = vmatprep.mubr.f32.mxu0 0.0
    %1365 = vmatmul.mubr.f32.gmra.mxu0 %v1232
    %v1366 = vpop.f32.mrf.mxu0
    %v1367 = vadd.f32 0.0, %v1366
    %v1368 = vpop.f32.mrf.mxu0
    %1369 = vmatprep.mubr.f32.mxu0 0.0
    %1370 = vmatmul.mubr.f32.gmra.mxu0 %v1233
    %v1371 = vpop.f32.mrf.mxu0
    %v1372 = vadd.f32 0.0, %v1371
    %v1373 = vpop.f32.mrf.mxu0
    %1374 = vmatprep.mubr.f32.mxu0 0.0
    %1375 = vmatmul.mubr.f32.gmra.mxu0 %v1234
    %v1376 = vpop.f32.mrf.mxu0
    %v1377 = vadd.f32 0.0, %v1376
    %v1378 = vpop.f32.mrf.mxu0
    %1379 = vmatprep.mubr.f32.mxu0 0.0
    %1380 = vmatmul.mubr.f32.gmra.mxu0 %v1235
    %v1381 = vpop.f32.mrf.mxu0
    %v1382 = vadd.f32 0.0, %v1381
    %v1383 = vpop.f32.mrf.mxu0
    %1384 = vmatprep.mubr.f32.mxu0 0.0
    %1385 = vmatmul.mubr.f32.gmra.mxu0 %v1236
    %v1386 = vpop.f32.mrf.mxu0
    %v1387 = vadd.f32 0.0, %v1386
    %v1388 = vpop.f32.mrf.mxu0
    %1389 = vmatprep.mubr.f32.mxu0 0.0
    %1390 = vmatmul.mubr.f32.gmra.mxu0 %v1237
    %v1391 = vpop.f32.mrf.mxu0
    %v1392 = vadd.f32 0.0, %v1391
    %v1393 = vpop.f32.mrf.mxu0
    %1394 = vmatprep.mubr.f32.mxu0 0.0
    %1395 = vmatmul.mubr.f32.gmra.mxu0 %v1238
    %v1396 = vpop.f32.mrf.mxu0
    %v1397 = vadd.f32 0.0, %v1396
    %v1398 = vpop.f32.mrf.mxu0
    %1399 = vmatprep.mubr.f32.mxu0 0.0
    %1400 = vmatmul.mubr.f32.gmra.mxu0 %v1239
    %v1401 = vpop.f32.mrf.mxu0
    %v1402 = vadd.f32 0.0, %v1401
    %v1403 = vpop.f32.mrf.mxu0
    %1404 = vmatprep.mubr.f32.mxu0 0.0
    %1405 = vmatmul.mubr.f32.gmra.mxu0 %v1240
    %v1406 = vpop.f32.mrf.mxu0
    %v1407 = vadd.f32 0.0, %v1406
    %v1408 = vpop.f32.mrf.mxu0
    %1409 = vmatprep.mubr.f32.mxu0 0.0
    %1410 = vmatmul.mubr.f32.gmra.mxu0 %v1241
    %v1411 = vpop.f32.mrf.mxu0
    %v1412 = vadd.f32 0.0, %v1411
    %v1413 = vpop.f32.mrf.mxu0
    %1414 = vmatprep.mubr.f32.mxu0 0.0
    %1415 = vmatmul.mubr.f32.gmra.mxu0 %v1242
    %v1416 = vpop.f32.mrf.mxu0
    %v1417 = vadd.f32 0.0, %v1416
    %v1418 = vpop.f32.mrf.mxu0
    %1419 = vmatprep.mubr.f32.mxu0 0.0
    %1420 = vmatmul.mubr.f32.gmra.mxu0 %v1243
    %v1421 = vpop.f32.mrf.mxu0
    %v1422 = vadd.f32 0.0, %v1421
    %v1423 = vpop.f32.mrf.mxu0
    %1424 = vmatprep.mubr.f32.mxu0 0.0
    %1425 = vmatmul.mubr.f32.gmra.mxu0 %v1244
    %v1426 = vpop.f32.mrf.mxu0
    %v1427 = vadd.f32 0.0, %v1426
    %v1428 = vpop.f32.mrf.mxu0
    %1429 = vmatprep.mubr.f32.mxu0 0.0
    %1430 = vmatmul.mubr.f32.gmra.mxu0 %v1245
    %v1431 = vpop.f32.mrf.mxu0
    %v1432 = vadd.f32 0.0, %v1431
    %v1433 = vpop.f32.mrf.mxu0
    %1434 = vmatprep.mubr.f32.mxu0 0.0
    %1435 = vmatmul.mubr.f32.gmra.mxu0 %v1246
    %v1436 = vpop.f32.mrf.mxu0
    %v1437 = vadd.f32 0.0, %v1436
    %v1438 = vpop.f32.mrf.mxu0
    %1439 = vmatprep.mubr.f32.mxu0 0.0
    %1440 = vmatmul.mubr.f32.gmra.mxu0 %v1247
    %v1441 = vpop.f32.mrf.mxu0
    %v1442 = vadd.f32 0.0, %v1441
    %v1443 = vpop.f32.mrf.mxu0
    %1444 = vmatprep.mubr.f32.mxu0 0.0
    %1445 = vmatmul.mubr.f32.gmra.mxu0 %v1248
    %v1446 = vpop.f32.mrf.mxu0
    %v1447 = vadd.f32 0.0, %v1446
    %v1448 = vpop.f32.mrf.mxu0
    %1449 = vmatprep.mubr.f32.mxu0 0.0
    %1450 = vmatmul.mubr.f32.gmra.mxu0 %v1249
    %v1451 = vpop.f32.mrf.mxu0
    %v1452 = vadd.f32 0.0, %v1451
    %v1453 = vpop.f32.mrf.mxu0
    %1454 = vmatprep.mubr.f32.mxu0 0.0
    %1455 = vmatmul.mubr.f32.gmra.mxu0 %v1250
    %v1456 = vpop.f32.mrf.mxu0
    %v1457 = vadd.f32 0.0, %v1456
    %v1458 = vpop.f32.mrf.mxu0
    %1459 = vmatprep.mubr.f32.mxu0 0.0
    %1460 = vmatmul.mubr.f32.gmra.mxu0 %v1251
    %v1461 = vpop.f32.mrf.mxu0
    %v1462 = vadd.f32 0.0, %v1461
    %v1463 = vpop.f32.mrf.mxu0
    %1464 = vmatprep.mubr.f32.mxu0 0.0
    %1465 = vmatmul.mubr.f32.gmra.mxu0 %v1252
    %v1466 = vpop.f32.mrf.mxu0
    %v1467 = vadd.f32 0.0, %v1466
    %v1468 = vpop.f32.mrf.mxu0
    %1469 = vmatprep.mubr.f32.mxu0 0.0
    %1470 = vmatmul.mubr.f32.gmra.mxu0 %v1253
    %v1471 = vpop.f32.mrf.mxu0
    %v1472 = vadd.f32 0.0, %v1471
    %v1473 = vpop.f32.mrf.mxu0
    %1474 = vmatprep.mubr.f32.mxu0 0.0
    %1475 = vmatmul.mubr.f32.gmra.mxu0 %v1254
    %v1476 = vpop.f32.mrf.mxu0
    %v1477 = vadd.f32 0.0, %v1476
    %v1478 = vpop.f32.mrf.mxu0
    %1479 = vmatprep.mubr.f32.mxu0 0.0
    %1480 = vmatmul.mubr.f32.gmra.mxu0 %v1255
    %v1481 = vpop.f32.mrf.mxu0
    %v1482 = vadd.f32 0.0, %v1481
    %v1483 = vpop.f32.mrf.mxu0
    %1484 = vmatprep.mubr.f32.mxu0 0.0
    %1485 = vmatmul.mubr.f32.gmra.mxu0 %v1256
    %v1486 = vpop.f32.mrf.mxu0
    %v1487 = vadd.f32 0.0, %v1486
    %v1488 = vpop.f32.mrf.mxu0
    %1489 = vmatprep.mubr.f32.mxu0 0.0
    %1490 = vmatmul.mubr.f32.gmra.mxu0 %v1257
    %v1491 = vpop.f32.mrf.mxu0
    %v1492 = vadd.f32 0.0, %v1491
    %v1493 = vpop.f32.mrf.mxu0
    %1494 = vmatprep.mubr.f32.mxu0 0.0
    %1495 = vmatmul.mubr.f32.gmra.mxu0 %v1258
    %v1496 = vpop.f32.mrf.mxu0
    %v1497 = vadd.f32 0.0, %v1496
    %v1498 = vpop.f32.mrf.mxu0
    %1499 = vmatprep.mubr.f32.mxu0 0.0
    %1500 = vmatmul.mubr.f32.gmra.mxu0 %v1259
    %v1501 = vpop.f32.mrf.mxu0
    %v1502 = vadd.f32 0.0, %v1501
    %v1503 = vpop.f32.mrf.mxu0
    %1504 = vmatprep.mubr.f32.mxu0 0.0
    %1505 = vmatmul.mubr.f32.gmra.mxu0 %v1260
    %v1506 = vpop.f32.mrf.mxu0
    %v1507 = vadd.f32 0.0, %v1506
    %v1508 = vpop.f32.mrf.mxu0
    %1509 = vmatprep.mubr.f32.mxu0 0.0
    %1510 = vmatmul.mubr.f32.gmra.mxu0 %v1261
    %v1511 = vpop.f32.mrf.mxu0
    %v1512 = vadd.f32 0.0, %v1511
    %v1513 = vpop.f32.mrf.mxu0
    %1514 = vmatprep.mubr.f32.mxu0 0.0
    %1515 = vmatmul.mubr.f32.gmra.mxu0 %v1262
    %v1516 = vpop.f32.mrf.mxu0
    %v1517 = vadd.f32 0.0, %v1516
    %v1518 = vpop.f32.mrf.mxu0
    %1519 = vmatprep.mubr.f32.mxu0 0.0
    %1520 = vmatmul.mubr.f32.gmra.mxu0 %v1263
    %v1521 = vpop.f32.mrf.mxu0
    %v1522 = vadd.f32 0.0, %v1521
    %v1523 = vpop.f32.mrf.mxu0
    %1524 = vmatprep.mubr.f32.mxu0 0.0
    %1525 = vmatmul.mubr.f32.gmra.mxu0 %v1264
    %v1526 = vpop.f32.mrf.mxu0
    %v1527 = vadd.f32 0.0, %v1526
    %v1528 = vpop.f32.mrf.mxu0
    %1529 = vdwg.mxu0
    %v1530 = vld [vmem:[#allocation2] sm:$0xff]
    %v1531 = vld [vmem:[#allocation2 + $0x8] sm:$0xff]
    %v1532 = vld [vmem:[#allocation2 + $0x10] sm:$0xff]
    %v1533 = vld [vmem:[#allocation2 + $0x18] sm:$0xff]
    %v1534 = vld [vmem:[#allocation2 + $0x20] sm:$0xff]
    %v1535 = vld [vmem:[#allocation2 + $0x28] sm:$0xff]
    %v1536 = vld [vmem:[#allocation2 + $0x30] sm:$0xff]
    %v1537 = vld [vmem:[#allocation2 + $0x38] sm:$0xff]
    %v1538 = vld [vmem:[#allocation2 + $0x40] sm:$0xff]
    %v1539 = vld [vmem:[#allocation2 + $0x48] sm:$0xff]
    %v1540 = vld [vmem:[#allocation2 + $0x50] sm:$0xff]
    %v1541 = vld [vmem:[#allocation2 + $0x58] sm:$0xff]
    %v1542 = vld [vmem:[#allocation2 + $0x60] sm:$0xff]
    %v1543 = vld [vmem:[#allocation2 + $0x68] sm:$0xff]
    %v1544 = vld [vmem:[#allocation2 + $0x70] sm:$0xff]
    %v1545 = vld [vmem:[#allocation2 + $0x78] sm:$0xff]
    %v1546 = vld [vmem:[#allocation2 + $0x80] sm:$0xff]
    %v1547 = vld [vmem:[#allocation2 + $0x88] sm:$0xff]
    %v1548 = vld [vmem:[#allocation2 + $0x90] sm:$0xff]
    %v1549 = vld [vmem:[#allocation2 + $0x98] sm:$0xff]
    %v1550 = vld [vmem:[#allocation2 + $0xa0] sm:$0xff]
    %v1551 = vld [vmem:[#allocation2 + $0xa8] sm:$0xff]
    %v1552 = vld [vmem:[#allocation2 + $0xb0] sm:$0xff]
    %v1553 = vld [vmem:[#allocation2 + $0xb8] sm:$0xff]
    %v1554 = vld [vmem:[#allocation2 + $0xc0] sm:$0xff]
    %v1555 = vld [vmem:[#allocation2 + $0xc8] sm:$0xff]
    %v1556 = vld [vmem:[#allocation2 + $0xd0] sm:$0xff]
    %v1557 = vld [vmem:[#allocation2 + $0xd8] sm:$0xff]
    %v1558 = vld [vmem:[#allocation2 + $0xe0] sm:$0xff]
    %v1559 = vld [vmem:[#allocation2 + $0xe8] sm:$0xff]
    %v1560 = vld [vmem:[#allocation2 + $0xf0] sm:$0xff]
    %v1561 = vld [vmem:[#allocation2 + $0xf8] sm:$0xff]
    %v1562 = vld [vmem:[#allocation2 + $0x100] sm:$0xff]
    %v1563 = vld [vmem:[#allocation2 + $0x108] sm:$0xff]
    %v1564 = vld [vmem:[#allocation2 + $0x110] sm:$0xff]
    %v1565 = vld [vmem:[#allocation2 + $0x118] sm:$0xff]
    %v1566 = vld [vmem:[#allocation2 + $0x120] sm:$0xff]
    %v1567 = vld [vmem:[#allocation2 + $0x128] sm:$0xff]
    %v1568 = vld [vmem:[#allocation2 + $0x130] sm:$0xff]
    %v1569 = vld [vmem:[#allocation2 + $0x138] sm:$0xff]
    %v1571 = vsel %vm723, %v1332, 0
    %v1574 = vsel %vm723, %v1337, 0
    %v1577 = vsel %vm723, %v1342, 0
    %v1580 = vsel %vm723, %v1347, 0
    %v1583 = vsel %vm723, %v1352, 0
    %v1586 = vsel %vm723, %v1357, 0
    %v1589 = vsel %vm723, %v1362, 0
    %v1592 = vsel %vm723, %v1367, 0
    %v1595 = vsel %vm723, %v1372, 0
    %v1598 = vsel %vm723, %v1377, 0
    %v1601 = vsel %vm723, %v1382, 0
    %v1604 = vsel %vm723, %v1387, 0
    %v1607 = vsel %vm723, %v1392, 0
    %v1610 = vsel %vm723, %v1397, 0
    %v1613 = vsel %vm723, %v1402, 0
    %v1616 = vsel %vm723, %v1407, 0
    %v1619 = vsel %vm723, %v1412, 0
    %v1622 = vsel %vm723, %v1417, 0
    %v1625 = vsel %vm723, %v1422, 0
    %v1628 = vsel %vm723, %v1427, 0
    %v1631 = vsel %vm723, %v1432, 0
    %v1634 = vsel %vm723, %v1437, 0
    %v1637 = vsel %vm723, %v1442, 0
    %v1640 = vsel %vm723, %v1447, 0
    %v1643 = vsel %vm723, %v1452, 0
    %v1646 = vsel %vm723, %v1457, 0
    %v1649 = vsel %vm723, %v1462, 0
    %v1652 = vsel %vm723, %v1467, 0
    %v1655 = vsel %vm723, %v1472, 0
    %v1658 = vsel %vm723, %v1477, 0
    %v1661 = vsel %vm723, %v1482, 0
    %v1664 = vsel %vm723, %v1487, 0
    %v1667 = vsel %vm723, %v1492, 0
    %v1670 = vsel %vm723, %v1497, 0
    %v1673 = vsel %vm723, %v1502, 0
    %v1676 = vsel %vm723, %v1507, 0
    %v1679 = vsel %vm723, %v1512, 0
    %v1682 = vsel %vm723, %v1517, 0
    %v1685 = vsel %vm723, %v1522, 0
    %v1688 = vsel %vm723, %v1527, 0
    %1690 = vmatprep.subr.mxu0 0.0
    %1691 = vmatpush1.msra.mxu0 0.0
    %1692 = vmatprep.subr.mxu0 0.0
    %1693 = vmatpush1.msra.mxu0 0.0
    %1694 = vmatprep.subr.mxu0 0.0
    %1695 = vmatpush1.msra.mxu0 0.0
    %1696 = vmatprep.subr.mxu0 0.0
    %1697 = vmatpush1.msra.mxu0 0.0
    %1698 = vmatprep.subr.mxu0 0.0
    %1699 = vmatpush1.msra.mxu0 0.0
    %1700 = vmatprep.subr.mxu0 0.0
    %1701 = vmatpush1.msra.mxu0 0.0
    %1702 = vmatprep.subr.mxu0 0.0
    %1703 = vmatpush1.msra.mxu0 0.0
    %1704 = vmatprep.subr.mxu0 0.0
    %1705 = vmatpush1.msra.mxu0 0.0
    %1706 = vmatprep.subr.mxu0 %v1566
    %1707 = vmatpush1.msra.mxu0 %v1565
    %1708 = vmatprep.subr.mxu0 %v1561
    %1709 = vmatpush1.msra.mxu0 %v1560
    %1710 = vmatprep.subr.mxu0 %v1556
    %1711 = vmatpush1.msra.mxu0 %v1555
    %1712 = vmatprep.subr.mxu0 %v1551
    %1713 = vmatpush1.msra.mxu0 %v1550
    %1714 = vmatprep.subr.mxu0 %v1546
    %1715 = vmatpush1.msra.mxu0 %v1545
    %1716 = vmatprep.subr.mxu0 %v1541
    %1717 = vmatpush1.msra.mxu0 %v1540
    %1718 = vmatprep.subr.mxu0 %v1536
    %1719 = vmatpush1.msra.mxu0 %v1535
    %1720 = vmatprep.subr.mxu0 %v1531
    %1721 = vmatpush1.msra.mxu0 %v1530
    %1722 = vmatprep.subr.mxu0 0.0
    %1723 = vmatpush2.msra.mxu0 0.0
    %1724 = vmatprep.subr.mxu0 0.0
    %1725 = vmatpush2.msra.mxu0 0.0
    %1726 = vmatprep.subr.mxu0 0.0
    %1727 = vmatpush2.msra.mxu0 0.0
    %1728 = vmatprep.subr.mxu0 0.0
    %1729 = vmatpush2.msra.mxu0 0.0
    %1730 = vmatprep.subr.mxu0 0.0
    %1731 = vmatpush2.msra.mxu0 0.0
    %1732 = vmatprep.subr.mxu0 0.0
    %1733 = vmatpush2.msra.mxu0 0.0
    %1734 = vmatprep.subr.mxu0 0.0
    %1735 = vmatpush2.msra.mxu0 0.0
    %1736 = vmatprep.subr.mxu0 0.0
    %1737 = vmatpush2.msra.mxu0 0.0
    %1738 = vmatprep.subr.mxu0 0.0
    %1739 = vmatpush2.msra.mxu0 0.0
    %1740 = vmatprep.subr.mxu0 0.0
    %1741 = vmatpush2.msra.mxu0 0.0
    %1742 = vmatprep.subr.mxu0 0.0
    %1743 = vmatpush2.msra.mxu0 0.0
    %1744 = vmatprep.subr.mxu0 0.0
    %1745 = vmatpush2.msra.mxu0 0.0
    %1746 = vmatprep.subr.mxu0 0.0
    %1747 = vmatpush2.msra.mxu0 0.0
    %1748 = vmatprep.subr.mxu0 0.0
    %1749 = vmatpush2.msra.mxu0 0.0
    %1750 = vmatprep.subr.mxu0 0.0
    %1751 = vmatpush2.msra.mxu0 0.0
    %1752 = vmatprep.subr.mxu0 0.0
    %1753 = vmatpush2.msra.mxu0 0.0
    %1754 = vmatprep.mubr.f32.mxu0 0.0
    %1755 = vmatmul.mubr.f32.gmra.mxu0 %v1571
    %v1756 = vpop.f32.mrf.mxu0
    %v1757 = vadd.f32 0.0, %v1756
    %v1758 = vpop.f32.mrf.mxu0
    %1759 = vmatprep.mubr.f32.mxu0 0.0
    %1760 = vmatmul.mubr.f32.gmra.mxu0 %v1574
    %v1761 = vpop.f32.mrf.mxu0
    %v1762 = vadd.f32 0.0, %v1761
    %v1763 = vpop.f32.mrf.mxu0
    %1764 = vmatprep.mubr.f32.mxu0 0.0
    %1765 = vmatmul.mubr.f32.gmra.mxu0 %v1577
    %v1766 = vpop.f32.mrf.mxu0
    %v1767 = vadd.f32 0.0, %v1766
    %v1768 = vpop.f32.mrf.mxu0
    %1769 = vmatprep.mubr.f32.mxu0 0.0
    %1770 = vmatmul.mubr.f32.gmra.mxu0 %v1580
    %v1771 = vpop.f32.mrf.mxu0
    %v1772 = vadd.f32 0.0, %v1771
    %v1773 = vpop.f32.mrf.mxu0
    %1774 = vmatprep.mubr.f32.mxu0 0.0
    %1775 = vmatmul.mubr.f32.gmra.mxu0 %v1583
    %v1776 = vpop.f32.mrf.mxu0
    %v1777 = vadd.f32 0.0, %v1776
    %v1778 = vpop.f32.mrf.mxu0
    %1779 = vmatprep.mubr.f32.mxu0 0.0
    %1780 = vmatmul.mubr.f32.gmra.mxu0 %v1586
    %v1781 = vpop.f32.mrf.mxu0
    %v1782 = vadd.f32 0.0, %v1781
    %v1783 = vpop.f32.mrf.mxu0
    %1784 = vmatprep.mubr.f32.mxu0 0.0
    %1785 = vmatmul.mubr.f32.gmra.mxu0 %v1589
    %v1786 = vpop.f32.mrf.mxu0
    %v1787 = vadd.f32 0.0, %v1786
    %v1788 = vpop.f32.mrf.mxu0
    %1789 = vmatprep.mubr.f32.mxu0 0.0
    %1790 = vmatmul.mubr.f32.gmra.mxu0 %v1592
    %v1791 = vpop.f32.mrf.mxu0
    %v1792 = vadd.f32 0.0, %v1791
    %v1793 = vpop.f32.mrf.mxu0
    %1794 = vmatprep.mubr.f32.mxu0 0.0
    %1795 = vmatmul.mubr.f32.gmra.mxu0 %v1595
    %v1796 = vpop.f32.mrf.mxu0
    %v1797 = vpop.f32.mrf.mxu0
    %v1798 = vadd.f32 0.0, %v1797
    %1799 = vmatprep.mubr.f32.mxu0 0.0
    %1800 = vmatmul.mubr.f32.gmra.mxu0 %v1598
    %v1801 = vpop.f32.mrf.mxu0
    %v1802 = vpop.f32.mrf.mxu0
    %v1803 = vadd.f32 0.0, %v1802
    %1804 = vmatprep.mubr.f32.mxu0 0.0
    %1805 = vmatmul.mubr.f32.gmra.mxu0 %v1601
    %v1806 = vpop.f32.mrf.mxu0
    %v1807 = vpop.f32.mrf.mxu0
    %v1808 = vadd.f32 0.0, %v1807
    %1809 = vmatprep.mubr.f32.mxu0 0.0
    %1810 = vmatmul.mubr.f32.gmra.mxu0 %v1604
    %v1811 = vpop.f32.mrf.mxu0
    %v1812 = vpop.f32.mrf.mxu0
    %v1813 = vadd.f32 0.0, %v1812
    %1814 = vmatprep.mubr.f32.mxu0 0.0
    %1815 = vmatmul.mubr.f32.gmra.mxu0 %v1607
    %v1816 = vpop.f32.mrf.mxu0
    %v1817 = vpop.f32.mrf.mxu0
    %v1818 = vadd.f32 0.0, %v1817
    %1819 = vmatprep.mubr.f32.mxu0 0.0
    %1820 = vmatmul.mubr.f32.gmra.mxu0 %v1610
    %v1821 = vpop.f32.mrf.mxu0
    %v1822 = vpop.f32.mrf.mxu0
    %v1823 = vadd.f32 0.0, %v1822
    %1824 = vmatprep.mubr.f32.mxu0 0.0
    %1825 = vmatmul.mubr.f32.gmra.mxu0 %v1613
    %v1826 = vpop.f32.mrf.mxu0
    %v1827 = vpop.f32.mrf.mxu0
    %v1828 = vadd.f32 0.0, %v1827
    %1829 = vmatprep.mubr.f32.mxu0 0.0
    %1830 = vmatmul.mubr.f32.gmra.mxu0 %v1616
    %v1831 = vpop.f32.mrf.mxu0
    %v1832 = vpop.f32.mrf.mxu0
    %v1833 = vadd.f32 0.0, %v1832
    %1834 = vmatprep.mubr.f32.mxu0 0.0
    %1835 = vmatmul.mubr.f32.gmra.mxu0 %v1619
    %v1836 = vpop.f32.mrf.mxu0
    %v1837 = vpop.f32.mrf.mxu0
    %1838 = vmatprep.mubr.f32.mxu0 0.0
    %1839 = vmatmul.mubr.f32.gmra.mxu0 %v1622
    %v1840 = vpop.f32.mrf.mxu0
    %v1841 = vpop.f32.mrf.mxu0
    %1842 = vmatprep.mubr.f32.mxu0 0.0
    %1843 = vmatmul.mubr.f32.gmra.mxu0 %v1625
    %v1844 = vpop.f32.mrf.mxu0
    %v1845 = vpop.f32.mrf.mxu0
    %1846 = vmatprep.mubr.f32.mxu0 0.0
    %1847 = vmatmul.mubr.f32.gmra.mxu0 %v1628
    %v1848 = vpop.f32.mrf.mxu0
    %v1849 = vpop.f32.mrf.mxu0
    %1850 = vmatprep.mubr.f32.mxu0 0.0
    %1851 = vmatmul.mubr.f32.gmra.mxu0 %v1631
    %v1852 = vpop.f32.mrf.mxu0
    %v1853 = vpop.f32.mrf.mxu0
    %1854 = vmatprep.mubr.f32.mxu0 0.0
    %1855 = vmatmul.mubr.f32.gmra.mxu0 %v1634
    %v1856 = vpop.f32.mrf.mxu0
    %v1857 = vpop.f32.mrf.mxu0
    %1858 = vmatprep.mubr.f32.mxu0 0.0
    %1859 = vmatmul.mubr.f32.gmra.mxu0 %v1637
    %v1860 = vpop.f32.mrf.mxu0
    %v1861 = vpop.f32.mrf.mxu0
    %1862 = vmatprep.mubr.f32.mxu0 0.0
    %1863 = vmatmul.mubr.f32.gmra.mxu0 %v1640
    %v1864 = vpop.f32.mrf.mxu0
    %v1865 = vpop.f32.mrf.mxu0
    %1866 = vmatprep.mubr.f32.mxu0 0.0
    %1867 = vmatmul.mubr.f32.gmra.mxu0 %v1643
    %v1868 = vpop.f32.mrf.mxu0
    %v1869 = vpop.f32.mrf.mxu0
    %1870 = vmatprep.mubr.f32.mxu0 0.0
    %1871 = vmatmul.mubr.f32.gmra.mxu0 %v1646
    %v1872 = vpop.f32.mrf.mxu0
    %v1873 = vpop.f32.mrf.mxu0
    %1874 = vmatprep.mubr.f32.mxu0 0.0
    %1875 = vmatmul.mubr.f32.gmra.mxu0 %v1649
    %v1876 = vpop.f32.mrf.mxu0
    %v1877 = vpop.f32.mrf.mxu0
    %1878 = vmatprep.mubr.f32.mxu0 0.0
    %1879 = vmatmul.mubr.f32.gmra.mxu0 %v1652
    %v1880 = vpop.f32.mrf.mxu0
    %v1881 = vpop.f32.mrf.mxu0
    %1882 = vmatprep.mubr.f32.mxu0 0.0
    %1883 = vmatmul.mubr.f32.gmra.mxu0 %v1655
    %v1884 = vpop.f32.mrf.mxu0
    %v1885 = vpop.f32.mrf.mxu0
    %1886 = vmatprep.mubr.f32.mxu0 0.0
    %1887 = vmatmul.mubr.f32.gmra.mxu0 %v1658
    %v1888 = vpop.f32.mrf.mxu0
    %v1889 = vpop.f32.mrf.mxu0
    %1890 = vmatprep.mubr.f32.mxu0 0.0
    %1891 = vmatmul.mubr.f32.gmra.mxu0 %v1661
    %v1892 = vpop.f32.mrf.mxu0
    %v1893 = vpop.f32.mrf.mxu0
    %1894 = vmatprep.mubr.f32.mxu0 0.0
    %1895 = vmatmul.mubr.f32.gmra.mxu0 %v1664
    %v1896 = vpop.f32.mrf.mxu0
    %v1897 = vpop.f32.mrf.mxu0
    %1898 = vmatprep.mubr.f32.mxu0 0.0
    %1899 = vmatmul.mubr.f32.gmra.mxu0 %v1667
    %v1900 = vpop.f32.mrf.mxu0
    %v1901 = vpop.f32.mrf.mxu0
    %1902 = vmatprep.mubr.f32.mxu0 0.0
    %1903 = vmatmul.mubr.f32.gmra.mxu0 %v1670
    %v1904 = vpop.f32.mrf.mxu0
    %v1905 = vpop.f32.mrf.mxu0
    %1906 = vmatprep.mubr.f32.mxu0 0.0
    %1907 = vmatmul.mubr.f32.gmra.mxu0 %v1673
    %v1908 = vpop.f32.mrf.mxu0
    %v1909 = vpop.f32.mrf.mxu0
    %1910 = vmatprep.mubr.f32.mxu0 0.0
    %1911 = vmatmul.mubr.f32.gmra.mxu0 %v1676
    %v1912 = vpop.f32.mrf.mxu0
    %v1913 = vpop.f32.mrf.mxu0
    %1914 = vmatprep.mubr.f32.mxu0 0.0
    %1915 = vmatmul.mubr.f32.gmra.mxu0 %v1679
    %v1916 = vpop.f32.mrf.mxu0
    %v1917 = vpop.f32.mrf.mxu0
    %1918 = vmatprep.mubr.f32.mxu0 0.0
    %1919 = vmatmul.mubr.f32.gmra.mxu0 %v1682
    %v1920 = vpop.f32.mrf.mxu0
    %v1921 = vpop.f32.mrf.mxu0
    %1922 = vmatprep.mubr.f32.mxu0 0.0
    %1923 = vmatmul.mubr.f32.gmra.mxu0 %v1685
    %v1924 = vpop.f32.mrf.mxu0
    %v1925 = vpop.f32.mrf.mxu0
    %1926 = vmatprep.mubr.f32.mxu0 0.0
    %1927 = vmatmul.mubr.f32.gmra.mxu0 %v1688
    %v1928 = vpop.f32.mrf.mxu0
    %v1929 = vpop.f32.mrf.mxu0
    %1930 = vdwg.mxu0
    %1931 = vmatprep.subr.mxu0 0.0
    %1932 = vmatpush1.msra.mxu0 0.0
    %1933 = vmatprep.subr.mxu0 0.0
    %1934 = vmatpush1.msra.mxu0 0.0
    %1935 = vmatprep.subr.mxu0 0.0
    %1936 = vmatpush1.msra.mxu0 0.0
    %1937 = vmatprep.subr.mxu0 0.0
    %1938 = vmatpush1.msra.mxu0 0.0
    %1939 = vmatprep.subr.mxu0 0.0
    %1940 = vmatpush1.msra.mxu0 0.0
    %1941 = vmatprep.subr.mxu0 0.0
    %1942 = vmatpush1.msra.mxu0 0.0
    %1943 = vmatprep.subr.mxu0 0.0
    %1944 = vmatpush1.msra.mxu0 0.0
    %1945 = vmatprep.subr.mxu0 0.0
    %1946 = vmatpush1.msra.mxu0 0.0
    %1947 = vmatprep.subr.mxu0 %v1568
    %1948 = vmatpush1.msra.mxu0 %v1567
    %1949 = vmatprep.subr.mxu0 %v1563
    %1950 = vmatpush1.msra.mxu0 %v1562
    %1951 = vmatprep.subr.mxu0 %v1558
    %1952 = vmatpush1.msra.mxu0 %v1557
    %1953 = vmatprep.subr.mxu0 %v1553
    %1954 = vmatpush1.msra.mxu0 %v1552
    %1955 = vmatprep.subr.mxu0 %v1548
    %1956 = vmatpush1.msra.mxu0 %v1547
    %1957 = vmatprep.subr.mxu0 %v1543
    %1958 = vmatpush1.msra.mxu0 %v1542
    %1959 = vmatprep.subr.mxu0 %v1538
    %1960 = vmatpush1.msra.mxu0 %v1537
    %1961 = vmatprep.subr.mxu0 %v1533
    %1962 = vmatpush1.msra.mxu0 %v1532
    %1963 = vmatprep.subr.mxu0 0.0
    %1964 = vmatpush2.msra.mxu0 0.0
    %1965 = vmatprep.subr.mxu0 0.0
    %1966 = vmatpush2.msra.mxu0 0.0
    %1967 = vmatprep.subr.mxu0 0.0
    %1968 = vmatpush2.msra.mxu0 0.0
    %1969 = vmatprep.subr.mxu0 0.0
    %1970 = vmatpush2.msra.mxu0 0.0
    %1971 = vmatprep.subr.mxu0 0.0
    %1972 = vmatpush2.msra.mxu0 0.0
    %1973 = vmatprep.subr.mxu0 0.0
    %1974 = vmatpush2.msra.mxu0 0.0
    %1975 = vmatprep.subr.mxu0 0.0
    %1976 = vmatpush2.msra.mxu0 0.0
    %1977 = vmatprep.subr.mxu0 0.0
    %1978 = vmatpush2.msra.mxu0 0.0
    %1979 = vmatprep.subr.mxu0 0.0
    %1980 = vmatpush2.msra.mxu0 0.0
    %1981 = vmatprep.subr.mxu0 0.0
    %1982 = vmatpush2.msra.mxu0 0.0
    %1983 = vmatprep.subr.mxu0 0.0
    %1984 = vmatpush2.msra.mxu0 0.0
    %1985 = vmatprep.subr.mxu0 0.0
    %1986 = vmatpush2.msra.mxu0 0.0
    %1987 = vmatprep.subr.mxu0 0.0
    %1988 = vmatpush2.msra.mxu0 0.0
    %1989 = vmatprep.subr.mxu0 0.0
    %1990 = vmatpush2.msra.mxu0 0.0
    %1991 = vmatprep.subr.mxu0 0.0
    %1992 = vmatpush2.msra.mxu0 0.0
    %1993 = vmatprep.subr.mxu0 0.0
    %1994 = vmatpush2.msra.mxu0 0.0
    %1995 = vmatprep.mubr.f32.mxu0 0.0
    %1996 = vmatmul.mubr.f32.gmra.mxu0 %v1571
    %v1997 = vpop.f32.mrf.mxu0
    %v1998 = vpop.f32.mrf.mxu0
    %1999 = vmatprep.mubr.f32.mxu0 0.0
    %2000 = vmatmul.mubr.f32.gmra.mxu0 %v1574
    %v2001 = vpop.f32.mrf.mxu0
    %v2002 = vpop.f32.mrf.mxu0
    %2003 = vmatprep.mubr.f32.mxu0 0.0
    %2004 = vmatmul.mubr.f32.gmra.mxu0 %v1577
    %v2005 = vpop.f32.mrf.mxu0
    %v2006 = vpop.f32.mrf.mxu0
    %2007 = vmatprep.mubr.f32.mxu0 0.0
    %2008 = vmatmul.mubr.f32.gmra.mxu0 %v1580
    %v2009 = vpop.f32.mrf.mxu0
    %v2010 = vpop.f32.mrf.mxu0
    %2011 = vmatprep.mubr.f32.mxu0 0.0
    %2012 = vmatmul.mubr.f32.gmra.mxu0 %v1583
    %v2013 = vpop.f32.mrf.mxu0
    %v2014 = vpop.f32.mrf.mxu0
    %2015 = vmatprep.mubr.f32.mxu0 0.0
    %2016 = vmatmul.mubr.f32.gmra.mxu0 %v1586
    %v2017 = vpop.f32.mrf.mxu0
    %v2018 = vpop.f32.mrf.mxu0
    %2019 = vmatprep.mubr.f32.mxu0 0.0
    %2020 = vmatmul.mubr.f32.gmra.mxu0 %v1589
    %v2021 = vpop.f32.mrf.mxu0
    %v2022 = vpop.f32.mrf.mxu0
    %2023 = vmatprep.mubr.f32.mxu0 0.0
    %2024 = vmatmul.mubr.f32.gmra.mxu0 %v1592
    %v2025 = vpop.f32.mrf.mxu0
    %v2026 = vpop.f32.mrf.mxu0
    %2027 = vmatprep.mubr.f32.mxu0 0.0
    %2028 = vmatmul.mubr.f32.gmra.mxu0 %v1595
    %v2029 = vpop.f32.mrf.mxu0
    %v2030 = vpop.f32.mrf.mxu0
    %2031 = vmatprep.mubr.f32.mxu0 0.0
    %2032 = vmatmul.mubr.f32.gmra.mxu0 %v1598
    %v2033 = vpop.f32.mrf.mxu0
    %v2034 = vpop.f32.mrf.mxu0
    %2035 = vmatprep.mubr.f32.mxu0 0.0
    %2036 = vmatmul.mubr.f32.gmra.mxu0 %v1601
    %v2037 = vpop.f32.mrf.mxu0
    %v2038 = vpop.f32.mrf.mxu0
    %2039 = vmatprep.mubr.f32.mxu0 0.0
    %2040 = vmatmul.mubr.f32.gmra.mxu0 %v1604
    %v2041 = vpop.f32.mrf.mxu0
    %v2042 = vpop.f32.mrf.mxu0
    %2043 = vmatprep.mubr.f32.mxu0 0.0
    %2044 = vmatmul.mubr.f32.gmra.mxu0 %v1607
    %v2045 = vpop.f32.mrf.mxu0
    %v2046 = vpop.f32.mrf.mxu0
    %2047 = vmatprep.mubr.f32.mxu0 0.0
    %2048 = vmatmul.mubr.f32.gmra.mxu0 %v1610
    %v2049 = vpop.f32.mrf.mxu0
    %v2050 = vpop.f32.mrf.mxu0
    %2051 = vmatprep.mubr.f32.mxu0 0.0
    %2052 = vmatmul.mubr.f32.gmra.mxu0 %v1613
    %v2053 = vpop.f32.mrf.mxu0
    %v2054 = vpop.f32.mrf.mxu0
    %2055 = vmatprep.mubr.f32.mxu0 0.0
    %2056 = vmatmul.mubr.f32.gmra.mxu0 %v1616
    %v2057 = vpop.f32.mrf.mxu0
    %v2058 = vpop.f32.mrf.mxu0
    %2059 = vmatprep.mubr.f32.mxu0 0.0
    %2060 = vmatmul.mubr.f32.gmra.mxu0 %v1619
    %v2061 = vpop.f32.mrf.mxu0
    %v2062 = vadd.f32 0.0, %v2061
    %v2063 = vpop.f32.mrf.mxu0
    %2064 = vmatprep.mubr.f32.mxu0 0.0
    %2065 = vmatmul.mubr.f32.gmra.mxu0 %v1622
    %v2066 = vpop.f32.mrf.mxu0
    %v2067 = vadd.f32 0.0, %v2066
    %v2068 = vpop.f32.mrf.mxu0
    %2069 = vmatprep.mubr.f32.mxu0 0.0
    %2070 = vmatmul.mubr.f32.gmra.mxu0 %v1625
    %v2071 = vpop.f32.mrf.mxu0
    %v2072 = vadd.f32 0.0, %v2071
    %v2073 = vpop.f32.mrf.mxu0
    %2074 = vmatprep.mubr.f32.mxu0 0.0
    %2075 = vmatmul.mubr.f32.gmra.mxu0 %v1628
    %v2076 = vpop.f32.mrf.mxu0
    %v2077 = vadd.f32 0.0, %v2076
    %v2078 = vpop.f32.mrf.mxu0
    %2079 = vmatprep.mubr.f32.mxu0 0.0
    %2080 = vmatmul.mubr.f32.gmra.mxu0 %v1631
    %v2081 = vpop.f32.mrf.mxu0
    %v2082 = vadd.f32 0.0, %v2081
    %v2083 = vpop.f32.mrf.mxu0
    %2084 = vmatprep.mubr.f32.mxu0 0.0
    %2085 = vmatmul.mubr.f32.gmra.mxu0 %v1634
    %v2086 = vpop.f32.mrf.mxu0
    %v2087 = vadd.f32 0.0, %v2086
    %v2088 = vpop.f32.mrf.mxu0
    %2089 = vmatprep.mubr.f32.mxu0 0.0
    %2090 = vmatmul.mubr.f32.gmra.mxu0 %v1637
    %v2091 = vpop.f32.mrf.mxu0
    %v2092 = vadd.f32 0.0, %v2091
    %v2093 = vpop.f32.mrf.mxu0
    %2094 = vmatprep.mubr.f32.mxu0 0.0
    %2095 = vmatmul.mubr.f32.gmra.mxu0 %v1640
    %v2096 = vpop.f32.mrf.mxu0
    %v2097 = vadd.f32 0.0, %v2096
    %v2098 = vpop.f32.mrf.mxu0
    %2099 = vmatprep.mubr.f32.mxu0 0.0
    %2100 = vmatmul.mubr.f32.gmra.mxu0 %v1643
    %v2101 = vpop.f32.mrf.mxu0
    %v2102 = vpop.f32.mrf.mxu0
    %v2103 = vadd.f32 0.0, %v2102
    %2104 = vmatprep.mubr.f32.mxu0 0.0
    %2105 = vmatmul.mubr.f32.gmra.mxu0 %v1646
    %v2106 = vpop.f32.mrf.mxu0
    %v2107 = vpop.f32.mrf.mxu0
    %v2108 = vadd.f32 0.0, %v2107
    %2109 = vmatprep.mubr.f32.mxu0 0.0
    %2110 = vmatmul.mubr.f32.gmra.mxu0 %v1649
    %v2111 = vpop.f32.mrf.mxu0
    %v2112 = vpop.f32.mrf.mxu0
    %v2113 = vadd.f32 0.0, %v2112
    %2114 = vmatprep.mubr.f32.mxu0 0.0
    %2115 = vmatmul.mubr.f32.gmra.mxu0 %v1652
    %v2116 = vpop.f32.mrf.mxu0
    %v2117 = vpop.f32.mrf.mxu0
    %v2118 = vadd.f32 0.0, %v2117
    %2119 = vmatprep.mubr.f32.mxu0 0.0
    %2120 = vmatmul.mubr.f32.gmra.mxu0 %v1655
    %v2121 = vpop.f32.mrf.mxu0
    %v2122 = vpop.f32.mrf.mxu0
    %v2123 = vadd.f32 0.0, %v2122
    %2124 = vmatprep.mubr.f32.mxu0 0.0
    %2125 = vmatmul.mubr.f32.gmra.mxu0 %v1658
    %v2126 = vpop.f32.mrf.mxu0
    %v2127 = vpop.f32.mrf.mxu0
    %v2128 = vadd.f32 0.0, %v2127
    %2129 = vmatprep.mubr.f32.mxu0 0.0
    %2130 = vmatmul.mubr.f32.gmra.mxu0 %v1661
    %v2131 = vpop.f32.mrf.mxu0
    %v2132 = vpop.f32.mrf.mxu0
    %v2133 = vadd.f32 0.0, %v2132
    %2134 = vmatprep.mubr.f32.mxu0 0.0
    %2135 = vmatmul.mubr.f32.gmra.mxu0 %v1664
    %v2136 = vpop.f32.mrf.mxu0
    %v2137 = vpop.f32.mrf.mxu0
    %v2138 = vadd.f32 0.0, %v2137
    %2139 = vmatprep.mubr.f32.mxu0 0.0
    %2140 = vmatmul.mubr.f32.gmra.mxu0 %v1667
    %v2141 = vpop.f32.mrf.mxu0
    %v2142 = vpop.f32.mrf.mxu0
    %2143 = vmatprep.mubr.f32.mxu0 0.0
    %2144 = vmatmul.mubr.f32.gmra.mxu0 %v1670
    %v2145 = vpop.f32.mrf.mxu0
    %v2146 = vpop.f32.mrf.mxu0
    %2147 = vmatprep.mubr.f32.mxu0 0.0
    %2148 = vmatmul.mubr.f32.gmra.mxu0 %v1673
    %v2149 = vpop.f32.mrf.mxu0
    %v2150 = vpop.f32.mrf.mxu0
    %2151 = vmatprep.mubr.f32.mxu0 0.0
    %2152 = vmatmul.mubr.f32.gmra.mxu0 %v1676
    %v2153 = vpop.f32.mrf.mxu0
    %v2154 = vpop.f32.mrf.mxu0
    %2155 = vmatprep.mubr.f32.mxu0 0.0
    %2156 = vmatmul.mubr.f32.gmra.mxu0 %v1679
    %v2157 = vpop.f32.mrf.mxu0
    %v2158 = vpop.f32.mrf.mxu0
    %2159 = vmatprep.mubr.f32.mxu0 0.0
    %2160 = vmatmul.mubr.f32.gmra.mxu0 %v1682
    %v2161 = vpop.f32.mrf.mxu0
    %v2162 = vpop.f32.mrf.mxu0
    %2163 = vmatprep.mubr.f32.mxu0 0.0
    %2164 = vmatmul.mubr.f32.gmra.mxu0 %v1685
    %v2165 = vpop.f32.mrf.mxu0
    %v2166 = vpop.f32.mrf.mxu0
    %2167 = vmatprep.mubr.f32.mxu0 0.0
    %2168 = vmatmul.mubr.f32.gmra.mxu0 %v1688
    %v2169 = vpop.f32.mrf.mxu0
    %v2170 = vpop.f32.mrf.mxu0
    %2171 = vdwg.mxu0
    %2172 = vmatprep.subr.mxu0 0.0
    %2173 = vmatpush1.msra.mxu0 0.0
    %2174 = vmatprep.subr.mxu0 0.0
    %2175 = vmatpush1.msra.mxu0 0.0
    %2176 = vmatprep.subr.mxu0 0.0
    %2177 = vmatpush1.msra.mxu0 0.0
    %2178 = vmatprep.subr.mxu0 0.0
    %2179 = vmatpush1.msra.mxu0 0.0
    %2180 = vmatprep.subr.mxu0 0.0
    %2181 = vmatpush1.msra.mxu0 0.0
    %2182 = vmatprep.subr.mxu0 0.0
    %2183 = vmatpush1.msra.mxu0 0.0
    %2184 = vmatprep.subr.mxu0 0.0
    %2185 = vmatpush1.msra.mxu0 0.0
    %2186 = vmatprep.subr.mxu0 0.0
    %2187 = vmatpush1.msra.mxu0 0.0
    %2188 = vmatprep.subr.mxu0 0.0
    %2189 = vmatpush1.msra.mxu0 %v1569
    %2190 = vmatprep.subr.mxu0 0.0
    %2191 = vmatpush1.msra.mxu0 %v1564
    %2192 = vmatprep.subr.mxu0 0.0
    %2193 = vmatpush1.msra.mxu0 %v1559
    %2194 = vmatprep.subr.mxu0 0.0
    %2195 = vmatpush1.msra.mxu0 %v1554
    %2196 = vmatprep.subr.mxu0 0.0
    %2197 = vmatpush1.msra.mxu0 %v1549
    %2198 = vmatprep.subr.mxu0 0.0
    %2199 = vmatpush1.msra.mxu0 %v1544
    %2200 = vmatprep.subr.mxu0 0.0
    %2201 = vmatpush1.msra.mxu0 %v1539
    %2202 = vmatprep.subr.mxu0 0.0
    %2203 = vmatpush1.msra.mxu0 %v1534
    %2204 = vmatprep.subr.mxu0 0.0
    %2205 = vmatpush2.msra.mxu0 0.0
    %2206 = vmatprep.subr.mxu0 0.0
    %2207 = vmatpush2.msra.mxu0 0.0
    %2208 = vmatprep.subr.mxu0 0.0
    %2209 = vmatpush2.msra.mxu0 0.0
    %2210 = vmatprep.subr.mxu0 0.0
    %2211 = vmatpush2.msra.mxu0 0.0
    %2212 = vmatprep.subr.mxu0 0.0
    %2213 = vmatpush2.msra.mxu0 0.0
    %2214 = vmatprep.subr.mxu0 0.0
    %2215 = vmatpush2.msra.mxu0 0.0
    %2216 = vmatprep.subr.mxu0 0.0
    %2217 = vmatpush2.msra.mxu0 0.0
    %2218 = vmatprep.subr.mxu0 0.0
    %2219 = vmatpush2.msra.mxu0 0.0
    %2220 = vmatprep.subr.mxu0 0.0
    %2221 = vmatpush2.msra.mxu0 0.0
    %2222 = vmatprep.subr.mxu0 0.0
    %2223 = vmatpush2.msra.mxu0 0.0
    %2224 = vmatprep.subr.mxu0 0.0
    %2225 = vmatpush2.msra.mxu0 0.0
    %2226 = vmatprep.subr.mxu0 0.0
    %2227 = vmatpush2.msra.mxu0 0.0
    %2228 = vmatprep.subr.mxu0 0.0
    %2229 = vmatpush2.msra.mxu0 0.0
    %2230 = vmatprep.subr.mxu0 0.0
    %2231 = vmatpush2.msra.mxu0 0.0
    %2232 = vmatprep.subr.mxu0 0.0
    %2233 = vmatpush2.msra.mxu0 0.0
    %2234 = vmatprep.subr.mxu0 0.0
    %2235 = vmatpush2.msra.mxu0 0.0
    %2236 = vmatprep.mubr.f32.mxu0 0.0
    %2237 = vmatmul.mubr.f32.gmra.mxu0 %v1571
    %v2238 = vpop.f32.mrf.mxu0
    %v2239 = vpop.f32.mrf.mxu0
    %2240 = vmatprep.mubr.f32.mxu0 0.0
    %2241 = vmatmul.mubr.f32.gmra.mxu0 %v1574
    %v2242 = vpop.f32.mrf.mxu0
    %v2243 = vpop.f32.mrf.mxu0
    %2244 = vmatprep.mubr.f32.mxu0 0.0
    %2245 = vmatmul.mubr.f32.gmra.mxu0 %v1577
    %v2246 = vpop.f32.mrf.mxu0
    %v2247 = vpop.f32.mrf.mxu0
    %2248 = vmatprep.mubr.f32.mxu0 0.0
    %2249 = vmatmul.mubr.f32.gmra.mxu0 %v1580
    %v2250 = vpop.f32.mrf.mxu0
    %v2251 = vpop.f32.mrf.mxu0
    %2252 = vmatprep.mubr.f32.mxu0 0.0
    %2253 = vmatmul.mubr.f32.gmra.mxu0 %v1583
    %v2254 = vpop.f32.mrf.mxu0
    %v2255 = vpop.f32.mrf.mxu0
    %2256 = vmatprep.mubr.f32.mxu0 0.0
    %2257 = vmatmul.mubr.f32.gmra.mxu0 %v1586
    %v2258 = vpop.f32.mrf.mxu0
    %v2259 = vpop.f32.mrf.mxu0
    %2260 = vmatprep.mubr.f32.mxu0 0.0
    %2261 = vmatmul.mubr.f32.gmra.mxu0 %v1589
    %v2262 = vpop.f32.mrf.mxu0
    %v2263 = vpop.f32.mrf.mxu0
    %2264 = vmatprep.mubr.f32.mxu0 0.0
    %2265 = vmatmul.mubr.f32.gmra.mxu0 %v1592
    %v2266 = vpop.f32.mrf.mxu0
    %v2267 = vpop.f32.mrf.mxu0
    %2268 = vmatprep.mubr.f32.mxu0 0.0
    %2269 = vmatmul.mubr.f32.gmra.mxu0 %v1595
    %v2270 = vpop.f32.mrf.mxu0
    %v2271 = vpop.f32.mrf.mxu0
    %2272 = vmatprep.mubr.f32.mxu0 0.0
    %2273 = vmatmul.mubr.f32.gmra.mxu0 %v1598
    %v2274 = vpop.f32.mrf.mxu0
    %v2275 = vpop.f32.mrf.mxu0
    %2276 = vmatprep.mubr.f32.mxu0 0.0
    %2277 = vmatmul.mubr.f32.gmra.mxu0 %v1601
    %v2278 = vpop.f32.mrf.mxu0
    %v2279 = vpop.f32.mrf.mxu0
    %2280 = vmatprep.mubr.f32.mxu0 0.0
    %2281 = vmatmul.mubr.f32.gmra.mxu0 %v1604
    %v2282 = vpop.f32.mrf.mxu0
    %v2283 = vpop.f32.mrf.mxu0
    %2284 = vmatprep.mubr.f32.mxu0 0.0
    %2285 = vmatmul.mubr.f32.gmra.mxu0 %v1607
    %v2286 = vpop.f32.mrf.mxu0
    %v2287 = vpop.f32.mrf.mxu0
    %2288 = vmatprep.mubr.f32.mxu0 0.0
    %2289 = vmatmul.mubr.f32.gmra.mxu0 %v1610
    %v2290 = vpop.f32.mrf.mxu0
    %v2291 = vpop.f32.mrf.mxu0
    %2292 = vmatprep.mubr.f32.mxu0 0.0
    %2293 = vmatmul.mubr.f32.gmra.mxu0 %v1613
    %v2294 = vpop.f32.mrf.mxu0
    %v2295 = vpop.f32.mrf.mxu0
    %2296 = vmatprep.mubr.f32.mxu0 0.0
    %2297 = vmatmul.mubr.f32.gmra.mxu0 %v1616
    %v2298 = vpop.f32.mrf.mxu0
    %v2299 = vpop.f32.mrf.mxu0
    %2300 = vmatprep.mubr.f32.mxu0 0.0
    %2301 = vmatmul.mubr.f32.gmra.mxu0 %v1619
    %v2302 = vpop.f32.mrf.mxu0
    %v2303 = vpop.f32.mrf.mxu0
    %2304 = vmatprep.mubr.f32.mxu0 0.0
    %2305 = vmatmul.mubr.f32.gmra.mxu0 %v1622
    %v2306 = vpop.f32.mrf.mxu0
    %v2307 = vpop.f32.mrf.mxu0
    %2308 = vmatprep.mubr.f32.mxu0 0.0
    %2309 = vmatmul.mubr.f32.gmra.mxu0 %v1625
    %v2310 = vpop.f32.mrf.mxu0
    %v2311 = vpop.f32.mrf.mxu0
    %2312 = vmatprep.mubr.f32.mxu0 0.0
    %2313 = vmatmul.mubr.f32.gmra.mxu0 %v1628
    %v2314 = vpop.f32.mrf.mxu0
    %v2315 = vpop.f32.mrf.mxu0
    %2316 = vmatprep.mubr.f32.mxu0 0.0
    %2317 = vmatmul.mubr.f32.gmra.mxu0 %v1631
    %v2318 = vpop.f32.mrf.mxu0
    %v2319 = vpop.f32.mrf.mxu0
    %2320 = vmatprep.mubr.f32.mxu0 0.0
    %2321 = vmatmul.mubr.f32.gmra.mxu0 %v1634
    %v2322 = vpop.f32.mrf.mxu0
    %v2323 = vpop.f32.mrf.mxu0
    %2324 = vmatprep.mubr.f32.mxu0 0.0
    %2325 = vmatmul.mubr.f32.gmra.mxu0 %v1637
    %v2326 = vpop.f32.mrf.mxu0
    %v2327 = vpop.f32.mrf.mxu0
    %2328 = vmatprep.mubr.f32.mxu0 0.0
    %2329 = vmatmul.mubr.f32.gmra.mxu0 %v1640
    %v2330 = vpop.f32.mrf.mxu0
    %v2331 = vpop.f32.mrf.mxu0
    %2332 = vmatprep.mubr.f32.mxu0 0.0
    %2333 = vmatmul.mubr.f32.gmra.mxu0 %v1643
    %v2334 = vpop.f32.mrf.mxu0
    %v2335 = vpop.f32.mrf.mxu0
    %2336 = vmatprep.mubr.f32.mxu0 0.0
    %2337 = vmatmul.mubr.f32.gmra.mxu0 %v1646
    %v2338 = vpop.f32.mrf.mxu0
    %v2339 = vpop.f32.mrf.mxu0
    %2340 = vmatprep.mubr.f32.mxu0 0.0
    %2341 = vmatmul.mubr.f32.gmra.mxu0 %v1649
    %v2342 = vpop.f32.mrf.mxu0
    %v2343 = vpop.f32.mrf.mxu0
    %2344 = vmatprep.mubr.f32.mxu0 0.0
    %2345 = vmatmul.mubr.f32.gmra.mxu0 %v1652
    %v2346 = vpop.f32.mrf.mxu0
    %v2347 = vpop.f32.mrf.mxu0
    %2348 = vmatprep.mubr.f32.mxu0 0.0
    %2349 = vmatmul.mubr.f32.gmra.mxu0 %v1655
    %v2350 = vpop.f32.mrf.mxu0
    %v2351 = vpop.f32.mrf.mxu0
    %2352 = vmatprep.mubr.f32.mxu0 0.0
    %2353 = vmatmul.mubr.f32.gmra.mxu0 %v1658
    %v2354 = vpop.f32.mrf.mxu0
    %v2355 = vpop.f32.mrf.mxu0
    %2356 = vmatprep.mubr.f32.mxu0 0.0
    %2357 = vmatmul.mubr.f32.gmra.mxu0 %v1661
    %v2358 = vpop.f32.mrf.mxu0
    %v2359 = vpop.f32.mrf.mxu0
    %2360 = vmatprep.mubr.f32.mxu0 0.0
    %2361 = vmatmul.mubr.f32.gmra.mxu0 %v1664
    %v2362 = vpop.f32.mrf.mxu0
    %v2363 = vpop.f32.mrf.mxu0
    %2364 = vmatprep.mubr.f32.mxu0 0.0
    %2365 = vmatmul.mubr.f32.gmra.mxu0 %v1667
    %v2366 = vpop.f32.mrf.mxu0
    %v2367 = vadd.f32 0.0, %v2366
    %v2368 = vpop.f32.mrf.mxu0
    %2369 = vmatprep.mubr.f32.mxu0 0.0
    %2370 = vmatmul.mubr.f32.gmra.mxu0 %v1670
    %v2371 = vpop.f32.mrf.mxu0
    %v2372 = vadd.f32 0.0, %v2371
    %v2373 = vpop.f32.mrf.mxu0
    %2374 = vmatprep.mubr.f32.mxu0 0.0
    %2375 = vmatmul.mubr.f32.gmra.mxu0 %v1673
    %v2376 = vpop.f32.mrf.mxu0
    %v2377 = vadd.f32 0.0, %v2376
    %v2378 = vpop.f32.mrf.mxu0
    %2379 = vmatprep.mubr.f32.mxu0 0.0
    %2380 = vmatmul.mubr.f32.gmra.mxu0 %v1676
    %v2381 = vpop.f32.mrf.mxu0
    %v2382 = vadd.f32 0.0, %v2381
    %v2383 = vpop.f32.mrf.mxu0
    %2384 = vmatprep.mubr.f32.mxu0 0.0
    %2385 = vmatmul.mubr.f32.gmra.mxu0 %v1679
    %v2386 = vpop.f32.mrf.mxu0
    %v2387 = vadd.f32 0.0, %v2386
    %v2388 = vpop.f32.mrf.mxu0
    %2389 = vmatprep.mubr.f32.mxu0 0.0
    %2390 = vmatmul.mubr.f32.gmra.mxu0 %v1682
    %v2391 = vpop.f32.mrf.mxu0
    %v2392 = vadd.f32 0.0, %v2391
    %v2393 = vpop.f32.mrf.mxu0
    %2394 = vmatprep.mubr.f32.mxu0 0.0
    %2395 = vmatmul.mubr.f32.gmra.mxu0 %v1685
    %v2396 = vpop.f32.mrf.mxu0
    %v2397 = vadd.f32 0.0, %v2396
    %v2398 = vpop.f32.mrf.mxu0
    %2399 = vmatprep.mubr.f32.mxu0 0.0
    %2400 = vmatmul.mubr.f32.gmra.mxu0 %v1688
    %v2401 = vpop.f32.mrf.mxu0
    %v2402 = vadd.f32 0.0, %v2401
    %v2403 = vpop.f32.mrf.mxu0
    %2404 = vdwg.mxu0
    %v2405 = vadd.f32 %v1757, %v1798
    %v2406 = vadd.f32 %v1762, %v1803
    %v2407 = vadd.f32 %v1767, %v1808
    %v2408 = vadd.f32 %v1772, %v1813
    %v2409 = vadd.f32 %v1777, %v1818
    %v2410 = vadd.f32 %v1782, %v1823
    %v2411 = vadd.f32 %v1787, %v1828
    %v2412 = vadd.f32 %v1792, %v1833
    %v2413 = vadd.f32 %v2062, %v2103
    %v2414 = vadd.f32 %v2067, %v2108
    %v2415 = vadd.f32 %v2072, %v2113
    %v2416 = vadd.f32 %v2077, %v2118
    %v2417 = vadd.f32 %v2082, %v2123
    %v2418 = vadd.f32 %v2087, %v2128
    %v2419 = vadd.f32 %v2092, %v2133
    %v2420 = vadd.f32 %v2097, %v2138
    %v2421 = vadd.f32 %v2405, %v2413
    %v2422 = vadd.f32 %v2406, %v2414
    %v2423 = vadd.f32 %v2407, %v2415
    %v2424 = vadd.f32 %v2408, %v2416
    %v2425 = vadd.f32 %v2409, %v2417
    %v2426 = vadd.f32 %v2410, %v2418
    %v2427 = vadd.f32 %v2411, %v2419
    %v2428 = vadd.f32 %v2412, %v2420
    %v2429 = vadd.f32 %v2421, %v2367
    %v2430 = vadd.f32 %v2422, %v2372
    %v2431 = vadd.f32 %v2423, %v2377
    %v2432 = vadd.f32 %v2424, %v2382
    %v2433 = vadd.f32 %v2425, %v2387
    %v2434 = vadd.f32 %v2426, %v2392
    %v2435 = vadd.f32 %v2427, %v2397
    %v2436 = vadd.f32 %v2428, %v2402
    %v2437 = vld [vmem:[%s4] sm:$0x1]
    %v2439 = vlaneseq
    %v2440 = vshrl.u32 %v2439, 7
    %v2441 = vsub.s32 0, %v2440
    %v2442 = vrot.slane %v2437, %v2441
    %v2444 = vadd.f32 %v2429, %v2442
    %v2445 = vadd.f32 %v2430, %v2442
    %v2446 = vadd.f32 %v2431, %v2442
    %v2447 = vadd.f32 %v2432, %v2442
    %v2448 = vadd.f32 %v2433, %v2442
    %v2449 = vadd.f32 %v2434, %v2442
    %v2450 = vadd.f32 %v2435, %v2442
    %v2451 = vadd.f32 %v2436, %v2442
    %2452 = vst [vmem:[#allocation7] sm:$0xff] %v2444
    %2453 = vst [vmem:[#allocation7 + $0x8] sm:$0xff] %v2445
    %2454 = vst [vmem:[#allocation7 + $0x10] sm:$0xff] %v2446
    %2455 = vst [vmem:[#allocation7 + $0x18] sm:$0xff] %v2447
    %2456 = vst [vmem:[#allocation7 + $0x20] sm:$0xff] %v2448
    %2457 = vst [vmem:[#allocation7 + $0x28] sm:$0xff] %v2449
    %2458 = vst [vmem:[#allocation7 + $0x30] sm:$0xff] %v2450
    %2459 = vst [vmem:[#allocation7 + $0x38] sm:$0xff] %v2451
    // Predicated region
    $region34: #{tpu_custom_call.1} parent=1 // pred_check
      _
    $region35: #{tpu_custom_call.1} parent=1 // pred_check_branch
      %2461 = sbr.rel (0) target = $region37
    $region36: #{tpu_custom_call.1} parent=1 // pred_region
      %s2463 = ssub.s32 1024, 1024
      %2464 = vsyncadd [#allocation4], %s2463
      %s2465 = sshll.u32 [#allocation7], 4
      %s2466 = int_to_ptr.vmem [resolvable:$true] %s2465
      %2471 = dma.vmem_to_hbm [thread:$0]  %s2466, 1024, %s6, [#allocation4], 128, 128, 8
    $region37: #{tpu_custom_call.1} parent=1 // pred_fallthru
      _
    // Predicated region
    $region38: #{tpu_custom_call.1} parent=1 // pred_check
      _
    $region39: #{tpu_custom_call.1} parent=1 // pred_check_branch
      %2473 = sbr.rel (0) target = $region41
    $region40: #{tpu_custom_call.1} parent=1 // pred_region
      %2474 = dma.done [#allocation4], 1024
    $region41: #{tpu_custom_call.1} parent=1 // pred_fallthru
      _
    %2475 = vsyncpa [#allocation3], 1
    %2476 = vsyncpa [#allocation6], 1
    %2477 = vsyncpa [#allocation4], 1

</llo_original>
